<compile_context>
chip_gen: v7x
topology: tpu7x:2x2x1
jax: 0.10.0
libtpu: 0.0.40
codegen_flags: <defaults>
</compile_context>

<pallas_src>
import jax
import jax.numpy as jnp
from jax import lax
from jax.experimental import pallas as pl
from jax.experimental.pallas import tpu as pltpu


def encoder_kernel(ids_ref, emb_ref, wih_ref, whh_ref, b_ref,
                   out_ref, h_ref, c_ref, gx_scr, out_scr):
    # ids_ref : (1, S*B_blk, 1) int32  time-major token ids of this batch chunk
    #                                  (row r = t*B_blk + b_local)
    # emb_ref : (V, H)     f32         embedding table
    # wih_ref : (H, 4*Hp)  f32         input->gate weights, gate blocks 128-lane aligned
    # whh_ref : (Hp, 4*Hp) f32         hidden->gate weights, padded rows/cols are zero
    # b_ref   : (1, 4*Hp)  f32         combined bias (b_ih + b_hh), padded lanes zero
    # out_ref : (B_blk, S, Hp) f32     per-step hidden states (batch-first, lane padded)
    # h_ref   : (B_blk, 1, Hp) f32     final hidden state
    # c_ref   : (B_blk, 1, Hp) f32     final cell state
    # gx_scr  : (S*B_blk, 4*Hp) f32    VMEM scratch: precomputed input-side gate terms
    # out_scr : (S, B_blk, Hp) f32     VMEM scratch: time-major per-step hidden states
    B_blk, S, Hp = out_ref.shape
    V = emb_ref.shape[0]
    SB = S * B_blk

    # ---- hoisted input projection (off the serial recurrence) ----
    # fused per-token gate table: (V, 4Hp) = emb @ W_ih_pad + (b_ih + b_hh)
    fused = jnp.dot(emb_ref[...], wih_ref[...],
                    preferred_element_type=jnp.float32) + b_ref[...]
    # one-hot "gather" of the whole chunk in a single MXU matmul:
    # gx[t*B_blk + b] = emb[id[t,b]] @ W_ih_pad + bias_pad
    ids = ids_ref[0]                                           # (SB, 1)
    iota_v = lax.broadcasted_iota(jnp.int32, (SB, V), 1)       # (SB, V)
    onehot = (ids == iota_v).astype(jnp.float32)               # (SB, V)
    gx_scr[...] = jnp.dot(onehot, fused, preferred_element_type=jnp.float32)

    whh = whh_ref[...]                                         # hoisted, read once

    # ---- LSTM recurrence (PyTorch gate order: i, f, g, o) ----
    def step(t, carry):
        h, c = carry
        # Only h @ W_hh is on the serial chain; the gx load is independent of h
        # and gets hoisted/prefetched by the unrolled scheduler.
        gates = jnp.dot(h, whh, preferred_element_type=jnp.float32) \
            + gx_scr[pl.ds(t * B_blk, B_blk), :]               # (B_blk, 4Hp)
        # gate slices land on 128-lane (vreg) boundaries -> no lane relayout
        i_g = jax.nn.sigmoid(gates[:, 0:Hp])
        f_g = jax.nn.sigmoid(gates[:, Hp:2 * Hp])
        g_g = jnp.tanh(gates[:, 2 * Hp:3 * Hp])
        o_g = jax.nn.sigmoid(gates[:, 3 * Hp:4 * Hp])
        c_new = f_g * c + i_g * g_g
        h_new = o_g * jnp.tanh(c_new)
        out_scr[t] = h_new          # one contiguous, lane-dense store per step
        return (h_new, c_new)

    h0 = jnp.zeros((B_blk, Hp), jnp.float32)
    c0 = jnp.zeros((B_blk, Hp), jnp.float32)
    hT, cT = lax.fori_loop(0, S, step, (h0, c0), unroll=min(S, 8))

    # single writeback, off the recurrence critical path:
    # time-major scratch -> batch-first lane-dense output block
    all_h = out_scr[...]                                       # (S, B_blk, Hp)
    for b in range(B_blk):                                     # static loop
        out_ref[b] = all_h[:, b, :]
    h_ref[...] = hT[:, None, :]
    c_ref[...] = cT[:, None, :]


def _pad_gate_cols(w, H, Hp):
    """(R, 4H) -> (R, 4Hp): place each gate block (i,f,g,o) at a 128-aligned
    lane offset, zero-fill the padded lanes."""
    R = w.shape[0]
    w4 = w.reshape(R, 4, H)
    out = jnp.zeros((R, 4, Hp), w.dtype).at[:, :, :H].set(w4)
    return out.reshape(R, 4 * Hp)


def _default_num_chunks(batch):
    # 2 batch chunks (parallel grid) only on chips with 2 TensorCores per chip
    # (v7x, v4 megacore).  On single-TC v5e/v6e extra chunks would only lengthen
    # the serial, latency-bound recurrence, so default to 1 there.
    try:
        kind = jax.devices()[0].device_kind.lower()
    except Exception:
        return 1
    if batch >= 2 and batch % 2 == 0 and any(v in kind for v in ("v7", "v4")):
        return 2
    return 1


def encoder_forward(x_ids, emb_w, w_ih, w_hh, b_ih, b_hh, *, num_chunks=None):
    """PyTorch-equivalent forward: returns (outputs, (hidden, cell))."""
    B, S = x_ids.shape
    V, H = emb_w.shape
    Hp = ((H + 127) // 128) * 128       # pad each gate to a full 128-lane block

    NC = _default_num_chunks(B) if num_chunks is None else num_chunks
    if NC < 1 or B % NC != 0:
        NC = 1
    B_blk = B // NC

    # glue (layout plumbing only): chunked time-major token ids, padded weights
    ids_chunked = (x_ids.astype(jnp.int32)
                   .reshape(NC, B_blk, S)
                   .transpose(0, 2, 1)
                   .reshape(NC, S * B_blk, 1))
    wih_pad = _pad_gate_cols(jnp.transpose(w_ih), H, Hp)               # (H, 4Hp)
    whh_pad = jnp.zeros((Hp, 4 * Hp), jnp.float32).at[:H, :].set(
        _pad_gate_cols(jnp.transpose(w_hh), H, Hp))                    # (Hp, 4Hp)
    bias_pad = _pad_gate_cols((b_ih + b_hh).reshape(1, 4 * H), H, Hp)  # (1, 4Hp)

    # accurate VMEM budget (live buffers are well under 1 MiB at these shapes):
    # ~3x logical f32 bytes (double-buffering + tile padding) + fixed headroom.
    logical_f32 = (V * H + H * 4 * Hp + Hp * 4 * Hp + 4 * Hp          # weights
                   + S * B_blk + B_blk * S * Hp + 2 * B_blk * Hp      # blocked in/out
                   + S * B_blk * 4 * Hp + S * B_blk * Hp)             # scratch
    vmem_limit = int(3 * 4 * logical_f32) + (4 << 20)

    out_pad, h_pad, c_pad = pl.pallas_call(
        encoder_kernel,
        out_shape=(
            jax.ShapeDtypeStruct((B, S, Hp), jnp.float32),   # batch-first, lane padded
            jax.ShapeDtypeStruct((B, 1, Hp), jnp.float32),
            jax.ShapeDtypeStruct((B, 1, Hp), jnp.float32),
        ),
        grid=(NC,),
        in_specs=[
            pl.BlockSpec((1, S * B_blk, 1), lambda i: (i, 0, 0)),    # ids chunk
            pl.BlockSpec((V, H), lambda i: (0, 0)),                  # embedding
            pl.BlockSpec((H, 4 * Hp), lambda i: (0, 0)),             # W_ih (padded)
            pl.BlockSpec((Hp, 4 * Hp), lambda i: (0, 0)),            # W_hh (padded)
            pl.BlockSpec((1, 4 * Hp), lambda i: (0, 0)),             # bias (padded)
        ],
        out_specs=(
            pl.BlockSpec((B_blk, S, Hp), lambda i: (i, 0, 0)),
            pl.BlockSpec((B_blk, 1, Hp), lambda i: (i, 0, 0)),
            pl.BlockSpec((B_blk, 1, Hp), lambda i: (i, 0, 0)),
        ),
        scratch_shapes=[
            pltpu.VMEM((S * B_blk, 4 * Hp), jnp.float32),   # input-side gate terms
            pltpu.VMEM((S, B_blk, Hp), jnp.float32),        # time-major hidden states
        ],
        compiler_params=pltpu.CompilerParams(
            dimension_semantics=("parallel",),
            vmem_limit_bytes=vmem_limit,
        ),
    )(ids_chunked, emb_w, wih_pad, whh_pad, bias_pad)

    outputs = out_pad[:, :, :H]       # drop lane padding (no-op when H % 128 == 0)
    hidden = h_pad[:, 0, :H][None]    # (1, B, H)
    cell = c_pad[:, 0, :H][None]      # (1, B, H)
    return outputs, (hidden, cell)


def reference_forward(x_ids, emb_w, w_ih, w_hh, b_ih, b_hh):
    """Pure-JAX reference matching torch.nn.Embedding + nn.LSTM(batch_first=True)."""
    B, S = x_ids.shape
    H = w_hh.shape[1]
    emb = jnp.take(emb_w, x_ids, axis=0)                       # (B, S, H)

    def step(carry, x_t):
        h, c = carry
        gates = x_t @ w_ih.T + h @ w_hh.T + b_ih + b_hh
        i = jax.nn.sigmoid(gates[:, 0:H])
        f = jax.nn.sigmoid(gates[:, H:2 * H])
        g = jnp.tanh(gates[:, 2 * H:3 * H])
        o = jax.nn.sigmoid(gates[:, 3 * H:4 * H])
        c = f * c + i * g
        h = o * jnp.tanh(c)
        return (h, c), h

    init = (jnp.zeros((B, H), jnp.float32), jnp.zeros((B, H), jnp.float32))
    (hT, cT), outs = lax.scan(step, init, jnp.transpose(emb, (1, 0, 2)))
    return jnp.transpose(outs, (1, 0, 2)), hT[None], cT[None]


if __name__ == "__main__":
    # Small deterministic config: vocab=16 (input_size), hidden=32, batch=2, seq=8
    V, H, B, S = 16, 32, 2, 8
    key = jax.random.PRNGKey(0)
    k_ids, k_emb, k_wih, k_whh, k_bih, k_bhh = jax.random.split(key, 6)

    x_ids = jax.random.randint(k_ids, (B, S), 0, V, dtype=jnp.int32)

    # nn.Embedding: N(0,1); nn.LSTM params: U(-1/sqrt(H), 1/sqrt(H))
    emb_w = jax.random.normal(k_emb, (V, H), dtype=jnp.float32)
    bound = 1.0 / jnp.sqrt(jnp.float32(H))
    w_ih = jax.random.uniform(k_wih, (4 * H, H), minval=-bound, maxval=bound,
                              dtype=jnp.float32)
    w_hh = jax.random.uniform(k_whh, (4 * H, H), minval=-bound, maxval=bound,
                              dtype=jnp.float32)
    b_ih = jax.random.uniform(k_bih, (4 * H,), minval=-bound, maxval=bound,
                              dtype=jnp.float32)
    b_hh = jax.random.uniform(k_bhh, (4 * H,), minval=-bound, maxval=bound,
                              dtype=jnp.float32)

    outputs, (hidden, cell) = jax.jit(encoder_forward)(
        x_ids, emb_w, w_ih, w_hh, b_ih, b_hh)
    jax.block_until_ready((outputs, hidden, cell))

    ref_out, ref_h, ref_c = reference_forward(x_ids, emb_w, w_ih, w_hh, b_ih, b_hh)

    assert outputs.shape == (B, S, H)
    assert hidden.shape == (1, B, H) and cell.shape == (1, B, H)
    assert jnp.allclose(outputs, ref_out, atol=1e-5, rtol=1e-5)
    assert jnp.allclose(hidden, ref_h, atol=1e-5, rtol=1e-5)
    assert jnp.allclose(cell, ref_c, atol=1e-5, rtol=1e-5)

    print("KERNEL_OK")
</pallas_src>

<mosaic_0001>
module attributes {stable_mosaic.version = 11 : i64} {
  func.func @encoder_kernel(%arg0: i32, %arg1: memref<1x16x1xi32, #tpu.memory_space<vmem>>, %arg2: memref<16x32xf32, #tpu.memory_space<vmem>>, %arg3: memref<32x512xf32, #tpu.memory_space<vmem>>, %arg4: memref<128x512xf32, #tpu.memory_space<vmem>>, %arg5: memref<1x512xf32, #tpu.memory_space<vmem>>, %arg6: memref<2x8x128xf32, #tpu.memory_space<vmem>>, %arg7: memref<2x1x128xf32, #tpu.memory_space<vmem>>, %arg8: memref<2x1x128xf32, #tpu.memory_space<vmem>>, %arg9: memref<16x512xf32, #tpu.memory_space<vmem>>, %arg10: memref<8x2x128xf32, #tpu.memory_space<vmem>>) attributes {dimension_semantics = [#tpu.dimension_semantics<parallel>], iteration_bounds = array<i64: 1>, scalar_prefetch = 0 : i64, scratch_operands = 2 : i64, tpu.core_type = #tpu.core_type<tc>, window_params = [{transform_indices = @transform_0, window_bounds = array<i64: 1, 16, 1>}, {pipeline_mode = #tpu.pipeline_mode<synchronous>, transform_indices = @transform_1, window_bounds = array<i64: 16, 32>}, {pipeline_mode = #tpu.pipeline_mode<synchronous>, transform_indices = @transform_2, window_bounds = array<i64: 32, 512>}, {pipeline_mode = #tpu.pipeline_mode<synchronous>, transform_indices = @transform_3, window_bounds = array<i64: 128, 512>}, {pipeline_mode = #tpu.pipeline_mode<synchronous>, transform_indices = @transform_4, window_bounds = array<i64: 1, 512>}, {transform_indices = @transform_5, window_bounds = array<i64: 2, 8, 128>}, {transform_indices = @transform_6, window_bounds = array<i64: 2, 1, 128>}, {transform_indices = @transform_7, window_bounds = array<i64: 2, 1, 128>}]} {
    %c0 = arith.constant 0 : index
    %c0_0 = arith.constant 0 : index
    %0 = vector.load %arg2[%c0, %c0_0] : memref<16x32xf32, #tpu.memory_space<vmem>>, vector<16x32xf32>
    %c0_1 = arith.constant 0 : index
    %c0_2 = arith.constant 0 : index
    %1 = vector.load %arg3[%c0_1, %c0_2] : memref<32x512xf32, #tpu.memory_space<vmem>>, vector<32x512xf32>
    %cst = arith.constant dense<0.000000e+00> : vector<16x512xf32>
    %2 = tpu.matmul %0, %1, %cst {dimension_numbers = #tpu.dot_dimension_numbers<[1], [0], [0], [1], [0, 0, 1, 1], [], []>} : vector<16x32xf32>, vector<32x512xf32>, vector<16x512xf32> -> vector<16x512xf32>
    %c0_3 = arith.constant 0 : index
    %c0_4 = arith.constant 0 : index
    %3 = vector.load %arg5[%c0_3, %c0_4] : memref<1x512xf32, #tpu.memory_space<vmem>>, vector<1x512xf32>
    %4 = vector.broadcast %3 : vector<1x512xf32> to vector<16x512xf32>
    %5 = arith.addf %2, %4 : vector<16x512xf32>
    %c0_5 = arith.constant 0 : index
    %c0_6 = arith.constant 0 : index
    %c0_7 = arith.constant 0 : index
    %6 = vector.load %arg1[%c0_5, %c0_6, %c0_7] : memref<1x16x1xi32, #tpu.memory_space<vmem>>, vector<1x16x1xi32>
    %7 = vector.shape_cast %6 : vector<1x16x1xi32> to vector<16x1xi32>
    %8 = tpu.iota {dimensions = array<i32: 1>} : vector<16x16xi32>
    %9 = vector.broadcast %7 : vector<16x1xi32> to vector<16x16xi32>
    %10 = arith.cmpi eq, %9, %8 : vector<16x16xi32>
    %11 = arith.extui %10 : vector<16x16xi1> to vector<16x16xi32>
    %12 = arith.sitofp %11 : vector<16x16xi32> to vector<16x16xf32>
    %cst_8 = arith.constant dense<0.000000e+00> : vector<16x512xf32>
    %13 = tpu.matmul %12, %5, %cst_8 {dimension_numbers = #tpu.dot_dimension_numbers<[1], [0], [0], [1], [0, 0, 1, 1], [], []>} : vector<16x16xf32>, vector<16x512xf32>, vector<16x512xf32> -> vector<16x512xf32>
    %c0_9 = arith.constant 0 : index
    %c0_10 = arith.constant 0 : index
    %14 = vector.load %arg9[%c0_9, %c0_10] : memref<16x512xf32, #tpu.memory_space<vmem>>, vector<16x512xf32>
    tpu.vector_store %arg9[%c0_9, %c0_10], %13 {strides = array<i32>} : memref<16x512xf32, #tpu.memory_space<vmem>>, vector<16x512xf32>,
    %c0_11 = arith.constant 0 : index
    %c0_12 = arith.constant 0 : index
    %15 = vector.load %arg4[%c0_11, %c0_12] : memref<128x512xf32, #tpu.memory_space<vmem>>, vector<128x512xf32>
    %cst_13 = arith.constant 0.000000e+00 : f32
    %16 = vector.broadcast %cst_13 : f32 to vector<2x128xf32>
    %cst_14 = arith.constant 0.000000e+00 : f32
    %17 = vector.broadcast %cst_14 : f32 to vector<2x128xf32>
    %c0_i32 = arith.constant 0 : i32
    %cst_15 = arith.constant dense<0.000000e+00> : vector<2x512xf32>
    %18 = tpu.matmul %16, %15, %cst_15 {dimension_numbers = #tpu.dot_dimension_numbers<[1], [0], [0], [1], [0, 0, 1, 1], [], []>} : vector<2x128xf32>, vector<128x512xf32>, vector<2x512xf32> -> vector<2x512xf32>
    %c2_i32 = arith.constant 2 : i32
    %19 = arith.muli %c0_i32, %c2_i32 : i32
    %20 = arith.index_cast %19 : i32 to index
    %c0_16 = arith.constant 0 : index
    %21 = vector.load %arg9[%20, %c0_16] : memref<16x512xf32, #tpu.memory_space<vmem>>, vector<2x512xf32>
    %22 = arith.addf %18, %21 : vector<2x512xf32>
    %23 = vector.extract_strided_slice %22 {offsets = [0, 0], sizes = [2, 128], strides = [1, 1]} : vector<2x512xf32> to vector<2x128xf32>
    %24 = arith.negf %23 : vector<2x128xf32>
    %25 = math.exp %24 : vector<2x128xf32>
    %cst_17 = arith.constant 1.000000e+00 : f32
    %26 = vector.broadcast %cst_17 : f32 to vector<2x128xf32>
    %27 = arith.addf %26, %25 : vector<2x128xf32>
    %28 = arith.divf %26, %27 : vector<2x128xf32>
    %29 = vector.extract_strided_slice %22 {offsets = [0, 128], sizes = [2, 128], strides = [1, 1]} : vector<2x512xf32> to vector<2x128xf32>
    %30 = arith.negf %29 : vector<2x128xf32>
    %31 = math.exp %30 : vector<2x128xf32>
    %cst_18 = arith.constant 1.000000e+00 : f32
    %32 = vector.broadcast %cst_18 : f32 to vector<2x128xf32>
    %33 = arith.addf %32, %31 : vector<2x128xf32>
    %34 = arith.divf %32, %33 : vector<2x128xf32>
    %35 = vector.extract_strided_slice %22 {offsets = [0, 256], sizes = [2, 128], strides = [1, 1]} : vector<2x512xf32> to vector<2x128xf32>
    %36 = math.tanh %35 : vector<2x128xf32>
    %37 = vector.extract_strided_slice %22 {offsets = [0, 384], sizes = [2, 128], strides = [1, 1]} : vector<2x512xf32> to vector<2x128xf32>
    %38 = arith.negf %37 : vector<2x128xf32>
    %39 = math.exp %38 : vector<2x128xf32>
    %cst_19 = arith.constant 1.000000e+00 : f32
    %40 = vector.broadcast %cst_19 : f32 to vector<2x128xf32>
    %41 = arith.addf %40, %39 : vector<2x128xf32>
    %42 = arith.divf %40, %41 : vector<2x128xf32>
    %43 = arith.mulf %34, %17 : vector<2x128xf32>
    %44 = arith.mulf %28, %36 : vector<2x128xf32>
    %45 = arith.addf %43, %44 : vector<2x128xf32>
    %46 = math.tanh %45 : vector<2x128xf32>
    %47 = arith.mulf %42, %46 : vector<2x128xf32>
    %48 = arith.index_cast %c0_i32 : i32 to index
    %c0_20 = arith.constant 0 : index
    %c0_21 = arith.constant 0 : index
    %49 = vector.load %arg10[%48, %c0_20, %c0_21] : memref<8x2x128xf32, #tpu.memory_space<vmem>>, vector<1x2x128xf32>
    %50 = vector.shape_cast %49 : vector<1x2x128xf32> to vector<2x128xf32>
    %51 = vector.shape_cast %47 : vector<2x128xf32> to vector<1x2x128xf32>
    tpu.vector_store %arg10[%48, %c0_20, %c0_21], %51 {strides = array<i32>} : memref<8x2x128xf32, #tpu.memory_space<vmem>>, vector<1x2x128xf32>,
    %c1_i32 = arith.constant 1 : i32
    %cst_22 = arith.constant dense<0.000000e+00> : vector<2x512xf32>
    %52 = tpu.matmul %47, %15, %cst_22 {dimension_numbers = #tpu.dot_dimension_numbers<[1], [0], [0], [1], [0, 0, 1, 1], [], []>} : vector<2x128xf32>, vector<128x512xf32>, vector<2x512xf32> -> vector<2x512xf32>
    %c2_i32_23 = arith.constant 2 : i32
    %53 = arith.muli %c1_i32, %c2_i32_23 : i32
    %54 = arith.index_cast %53 : i32 to index
    %c0_24 = arith.constant 0 : index
    %55 = vector.load %arg9[%54, %c0_24] : memref<16x512xf32, #tpu.memory_space<vmem>>, vector<2x512xf32>
    %56 = arith.addf %52, %55 : vector<2x512xf32>
    %57 = vector.extract_strided_slice %56 {offsets = [0, 0], sizes = [2, 128], strides = [1, 1]} : vector<2x512xf32> to vector<2x128xf32>
    %58 = arith.negf %57 : vector<2x128xf32>
    %59 = math.exp %58 : vector<2x128xf32>
    %cst_25 = arith.constant 1.000000e+00 : f32
    %60 = vector.broadcast %cst_25 : f32 to vector<2x128xf32>
    %61 = arith.addf %60, %59 : vector<2x128xf32>
    %62 = arith.divf %60, %61 : vector<2x128xf32>
    %63 = vector.extract_strided_slice %56 {offsets = [0, 128], sizes = [2, 128], strides = [1, 1]} : vector<2x512xf32> to vector<2x128xf32>
    %64 = arith.negf %63 : vector<2x128xf32>
    %65 = math.exp %64 : vector<2x128xf32>
    %cst_26 = arith.constant 1.000000e+00 : f32
    %66 = vector.broadcast %cst_26 : f32 to vector<2x128xf32>
    %67 = arith.addf %66, %65 : vector<2x128xf32>
    %68 = arith.divf %66, %67 : vector<2x128xf32>
    %69 = vector.extract_strided_slice %56 {offsets = [0, 256], sizes = [2, 128], strides = [1, 1]} : vector<2x512xf32> to vector<2x128xf32>
    %70 = math.tanh %69 : vector<2x128xf32>
    %71 = vector.extract_strided_slice %56 {offsets = [0, 384], sizes = [2, 128], strides = [1, 1]} : vector<2x512xf32> to vector<2x128xf32>
    %72 = arith.negf %71 : vector<2x128xf32>
    %73 = math.exp %72 : vector<2x128xf32>
    %cst_27 = arith.constant 1.000000e+00 : f32
    %74 = vector.broadcast %cst_27 : f32 to vector<2x128xf32>
    %75 = arith.addf %74, %73 : vector<2x128xf32>
    %76 = arith.divf %74, %75 : vector<2x128xf32>
    %77 = arith.mulf %68, %45 : vector<2x128xf32>
    %78 = arith.mulf %62, %70 : vector<2x128xf32>
    %79 = arith.addf %77, %78 : vector<2x128xf32>
    %80 = math.tanh %79 : vector<2x128xf32>
    %81 = arith.mulf %76, %80 : vector<2x128xf32>
    %82 = arith.index_cast %c1_i32 : i32 to index
    %c0_28 = arith.constant 0 : index
    %c0_29 = arith.constant 0 : index
    %83 = vector.load %arg10[%82, %c0_28, %c0_29] : memref<8x2x128xf32, #tpu.memory_space<vmem>>, vector<1x2x128xf32>
    %84 = vector.shape_cast %83 : vector<1x2x128xf32> to vector<2x128xf32>
    %85 = vector.shape_cast %81 : vector<2x128xf32> to vector<1x2x128xf32>
    tpu.vector_store %arg10[%82, %c0_28, %c0_29], %85 {strides = array<i32>} : memref<8x2x128xf32, #tpu.memory_space<vmem>>, vector<1x2x128xf32>,
    %c2_i32_30 = arith.constant 2 : i32
    %cst_31 = arith.constant dense<0.000000e+00> : vector<2x512xf32>
    %86 = tpu.matmul %81, %15, %cst_31 {dimension_numbers = #tpu.dot_dimension_numbers<[1], [0], [0], [1], [0, 0, 1, 1], [], []>} : vector<2x128xf32>, vector<128x512xf32>, vector<2x512xf32> -> vector<2x512xf32>
    %c2_i32_32 = arith.constant 2 : i32
    %87 = arith.muli %c2_i32_30, %c2_i32_32 : i32
    %88 = arith.index_cast %87 : i32 to index
    %c0_33 = arith.constant 0 : index
    %89 = vector.load %arg9[%88, %c0_33] : memref<16x512xf32, #tpu.memory_space<vmem>>, vector<2x512xf32>
    %90 = arith.addf %86, %89 : vector<2x512xf32>
    %91 = vector.extract_strided_slice %90 {offsets = [0, 0], sizes = [2, 128], strides = [1, 1]} : vector<2x512xf32> to vector<2x128xf32>
    %92 = arith.negf %91 : vector<2x128xf32>
    %93 = math.exp %92 : vector<2x128xf32>
    %cst_34 = arith.constant 1.000000e+00 : f32
    %94 = vector.broadcast %cst_34 : f32 to vector<2x128xf32>
    %95 = arith.addf %94, %93 : vector<2x128xf32>
    %96 = arith.divf %94, %95 : vector<2x128xf32>
    %97 = vector.extract_strided_slice %90 {offsets = [0, 128], sizes = [2, 128], strides = [1, 1]} : vector<2x512xf32> to vector<2x128xf32>
    %98 = arith.negf %97 : vector<2x128xf32>
    %99 = math.exp %98 : vector<2x128xf32>
    %cst_35 = arith.constant 1.000000e+00 : f32
    %100 = vector.broadcast %cst_35 : f32 to vector<2x128xf32>
    %101 = arith.addf %100, %99 : vector<2x128xf32>
    %102 = arith.divf %100, %101 : vector<2x128xf32>
    %103 = vector.extract_strided_slice %90 {offsets = [0, 256], sizes = [2, 128], strides = [1, 1]} : vector<2x512xf32> to vector<2x128xf32>
    %104 = math.tanh %103 : vector<2x128xf32>
    %105 = vector.extract_strided_slice %90 {offsets = [0, 384], sizes = [2, 128], strides = [1, 1]} : vector<2x512xf32> to vector<2x128xf32>
    %106 = arith.negf %105 : vector<2x128xf32>
    %107 = math.exp %106 : vector<2x128xf32>
    %cst_36 = arith.constant 1.000000e+00 : f32
    %108 = vector.broadcast %cst_36 : f32 to vector<2x128xf32>
    %109 = arith.addf %108, %107 : vector<2x128xf32>
    %110 = arith.divf %108, %109 : vector<2x128xf32>
    %111 = arith.mulf %102, %79 : vector<2x128xf32>
    %112 = arith.mulf %96, %104 : vector<2x128xf32>
    %113 = arith.addf %111, %112 : vector<2x128xf32>
    %114 = math.tanh %113 : vector<2x128xf32>
    %115 = arith.mulf %110, %114 : vector<2x128xf32>
    %116 = arith.index_cast %c2_i32_30 : i32 to index
    %c0_37 = arith.constant 0 : index
    %c0_38 = arith.constant 0 : index
    %117 = vector.load %arg10[%116, %c0_37, %c0_38] : memref<8x2x128xf32, #tpu.memory_space<vmem>>, vector<1x2x128xf32>
    %118 = vector.shape_cast %117 : vector<1x2x128xf32> to vector<2x128xf32>
    %119 = vector.shape_cast %115 : vector<2x128xf32> to vector<1x2x128xf32>
    tpu.vector_store %arg10[%116, %c0_37, %c0_38], %119 {strides = array<i32>} : memref<8x2x128xf32, #tpu.memory_space<vmem>>, vector<1x2x128xf32>,
    %c3_i32 = arith.constant 3 : i32
    %cst_39 = arith.constant dense<0.000000e+00> : vector<2x512xf32>
    %120 = tpu.matmul %115, %15, %cst_39 {dimension_numbers = #tpu.dot_dimension_numbers<[1], [0], [0], [1], [0, 0, 1, 1], [], []>} : vector<2x128xf32>, vector<128x512xf32>, vector<2x512xf32> -> vector<2x512xf32>
    %c2_i32_40 = arith.constant 2 : i32
    %121 = arith.muli %c3_i32, %c2_i32_40 : i32
    %122 = arith.index_cast %121 : i32 to index
    %c0_41 = arith.constant 0 : index
    %123 = vector.load %arg9[%122, %c0_41] : memref<16x512xf32, #tpu.memory_space<vmem>>, vector<2x512xf32>
    %124 = arith.addf %120, %123 : vector<2x512xf32>
    %125 = vector.extract_strided_slice %124 {offsets = [0, 0], sizes = [2, 128], strides = [1, 1]} : vector<2x512xf32> to vector<2x128xf32>
    %126 = arith.negf %125 : vector<2x128xf32>
    %127 = math.exp %126 : vector<2x128xf32>
    %cst_42 = arith.constant 1.000000e+00 : f32
    %128 = vector.broadcast %cst_42 : f32 to vector<2x128xf32>
    %129 = arith.addf %128, %127 : vector<2x128xf32>
    %130 = arith.divf %128, %129 : vector<2x128xf32>
    %131 = vector.extract_strided_slice %124 {offsets = [0, 128], sizes = [2, 128], strides = [1, 1]} : vector<2x512xf32> to vector<2x128xf32>
    %132 = arith.negf %131 : vector<2x128xf32>
    %133 = math.exp %132 : vector<2x128xf32>
    %cst_43 = arith.constant 1.000000e+00 : f32
    %134 = vector.broadcast %cst_43 : f32 to vector<2x128xf32>
    %135 = arith.addf %134, %133 : vector<2x128xf32>
    %136 = arith.divf %134, %135 : vector<2x128xf32>
    %137 = vector.extract_strided_slice %124 {offsets = [0, 256], sizes = [2, 128], strides = [1, 1]} : vector<2x512xf32> to vector<2x128xf32>
    %138 = math.tanh %137 : vector<2x128xf32>
    %139 = vector.extract_strided_slice %124 {offsets = [0, 384], sizes = [2, 128], strides = [1, 1]} : vector<2x512xf32> to vector<2x128xf32>
    %140 = arith.negf %139 : vector<2x128xf32>
    %141 = math.exp %140 : vector<2x128xf32>
    %cst_44 = arith.constant 1.000000e+00 : f32
    %142 = vector.broadcast %cst_44 : f32 to vector<2x128xf32>
    %143 = arith.addf %142, %141 : vector<2x128xf32>
    %144 = arith.divf %142, %143 : vector<2x128xf32>
    %145 = arith.mulf %136, %113 : vector<2x128xf32>
    %146 = arith.mulf %130, %138 : vector<2x128xf32>
    %147 = arith.addf %145, %146 : vector<2x128xf32>
    %148 = math.tanh %147 : vector<2x128xf32>
    %149 = arith.mulf %144, %148 : vector<2x128xf32>
    %150 = arith.index_cast %c3_i32 : i32 to index
    %c0_45 = arith.constant 0 : index
    %c0_46 = arith.constant 0 : index
    %151 = vector.load %arg10[%150, %c0_45, %c0_46] : memref<8x2x128xf32, #tpu.memory_space<vmem>>, vector<1x2x128xf32>
    %152 = vector.shape_cast %151 : vector<1x2x128xf32> to vector<2x128xf32>
    %153 = vector.shape_cast %149 : vector<2x128xf32> to vector<1x2x128xf32>
    tpu.vector_store %arg10[%150, %c0_45, %c0_46], %153 {strides = array<i32>} : memref<8x2x128xf32, #tpu.memory_space<vmem>>, vector<1x2x128xf32>,
    %c4_i32 = arith.constant 4 : i32
    %cst_47 = arith.constant dense<0.000000e+00> : vector<2x512xf32>
    %154 = tpu.matmul %149, %15, %cst_47 {dimension_numbers = #tpu.dot_dimension_numbers<[1], [0], [0], [1], [0, 0, 1, 1], [], []>} : vector<2x128xf32>, vector<128x512xf32>, vector<2x512xf32> -> vector<2x512xf32>
    %c2_i32_48 = arith.constant 2 : i32
    %155 = arith.muli %c4_i32, %c2_i32_48 : i32
    %156 = arith.index_cast %155 : i32 to index
    %c0_49 = arith.constant 0 : index
    %157 = vector.load %arg9[%156, %c0_49] : memref<16x512xf32, #tpu.memory_space<vmem>>, vector<2x512xf32>
    %158 = arith.addf %154, %157 : vector<2x512xf32>
    %159 = vector.extract_strided_slice %158 {offsets = [0, 0], sizes = [2, 128], strides = [1, 1]} : vector<2x512xf32> to vector<2x128xf32>
    %160 = arith.negf %159 : vector<2x128xf32>
    %161 = math.exp %160 : vector<2x128xf32>
    %cst_50 = arith.constant 1.000000e+00 : f32
    %162 = vector.broadcast %cst_50 : f32 to vector<2x128xf32>
    %163 = arith.addf %162, %161 : vector<2x128xf32>
    %164 = arith.divf %162, %163 : vector<2x128xf32>
    %165 = vector.extract_strided_slice %158 {offsets = [0, 128], sizes = [2, 128], strides = [1, 1]} : vector<2x512xf32> to vector<2x128xf32>
    %166 = arith.negf %165 : vector<2x128xf32>
    %167 = math.exp %166 : vector<2x128xf32>
    %cst_51 = arith.constant 1.000000e+00 : f32
    %168 = vector.broadcast %cst_51 : f32 to vector<2x128xf32>
    %169 = arith.addf %168, %167 : vector<2x128xf32>
    %170 = arith.divf %168, %169 : vector<2x128xf32>
    %171 = vector.extract_strided_slice %158 {offsets = [0, 256], sizes = [2, 128], strides = [1, 1]} : vector<2x512xf32> to vector<2x128xf32>
    %172 = math.tanh %171 : vector<2x128xf32>
    %173 = vector.extract_strided_slice %158 {offsets = [0, 384], sizes = [2, 128], strides = [1, 1]} : vector<2x512xf32> to vector<2x128xf32>
    %174 = arith.negf %173 : vector<2x128xf32>
    %175 = math.exp %174 : vector<2x128xf32>
    %cst_52 = arith.constant 1.000000e+00 : f32
    %176 = vector.broadcast %cst_52 : f32 to vector<2x128xf32>
    %177 = arith.addf %176, %175 : vector<2x128xf32>
    %178 = arith.divf %176, %177 : vector<2x128xf32>
    %179 = arith.mulf %170, %147 : vector<2x128xf32>
    %180 = arith.mulf %164, %172 : vector<2x128xf32>
    %181 = arith.addf %179, %180 : vector<2x128xf32>
    %182 = math.tanh %181 : vector<2x128xf32>
    %183 = arith.mulf %178, %182 : vector<2x128xf32>
    %184 = arith.index_cast %c4_i32 : i32 to index
    %c0_53 = arith.constant 0 : index
    %c0_54 = arith.constant 0 : index
    %185 = vector.load %arg10[%184, %c0_53, %c0_54] : memref<8x2x128xf32, #tpu.memory_space<vmem>>, vector<1x2x128xf32>
    %186 = vector.shape_cast %185 : vector<1x2x128xf32> to vector<2x128xf32>
    %187 = vector.shape_cast %183 : vector<2x128xf32> to vector<1x2x128xf32>
    tpu.vector_store %arg10[%184, %c0_53, %c0_54], %187 {strides = array<i32>} : memref<8x2x128xf32, #tpu.memory_space<vmem>>, vector<1x2x128xf32>,
    %c5_i32 = arith.constant 5 : i32
    %cst_55 = arith.constant dense<0.000000e+00> : vector<2x512xf32>
    %188 = tpu.matmul %183, %15, %cst_55 {dimension_numbers = #tpu.dot_dimension_numbers<[1], [0], [0], [1], [0, 0, 1, 1], [], []>} : vector<2x128xf32>, vector<128x512xf32>, vector<2x512xf32> -> vector<2x512xf32>
    %c2_i32_56 = arith.constant 2 : i32
    %189 = arith.muli %c5_i32, %c2_i32_56 : i32
    %190 = arith.index_cast %189 : i32 to index
    %c0_57 = arith.constant 0 : index
    %191 = vector.load %arg9[%190, %c0_57] : memref<16x512xf32, #tpu.memory_space<vmem>>, vector<2x512xf32>
    %192 = arith.addf %188, %191 : vector<2x512xf32>
    %193 = vector.extract_strided_slice %192 {offsets = [0, 0], sizes = [2, 128], strides = [1, 1]} : vector<2x512xf32> to vector<2x128xf32>
    %194 = arith.negf %193 : vector<2x128xf32>
    %195 = math.exp %194 : vector<2x128xf32>
    %cst_58 = arith.constant 1.000000e+00 : f32
    %196 = vector.broadcast %cst_58 : f32 to vector<2x128xf32>
    %197 = arith.addf %196, %195 : vector<2x128xf32>
    %198 = arith.divf %196, %197 : vector<2x128xf32>
    %199 = vector.extract_strided_slice %192 {offsets = [0, 128], sizes = [2, 128], strides = [1, 1]} : vector<2x512xf32> to vector<2x128xf32>
    %200 = arith.negf %199 : vector<2x128xf32>
    %201 = math.exp %200 : vector<2x128xf32>
    %cst_59 = arith.constant 1.000000e+00 : f32
    %202 = vector.broadcast %cst_59 : f32 to vector<2x128xf32>
    %203 = arith.addf %202, %201 : vector<2x128xf32>
    %204 = arith.divf %202, %203 : vector<2x128xf32>
    %205 = vector.extract_strided_slice %192 {offsets = [0, 256], sizes = [2, 128], strides = [1, 1]} : vector<2x512xf32> to vector<2x128xf32>
    %206 = math.tanh %205 : vector<2x128xf32>
    %207 = vector.extract_strided_slice %192 {offsets = [0, 384], sizes = [2, 128], strides = [1, 1]} : vector<2x512xf32> to vector<2x128xf32>
    %208 = arith.negf %207 : vector<2x128xf32>
    %209 = math.exp %208 : vector<2x128xf32>
    %cst_60 = arith.constant 1.000000e+00 : f32
    %210 = vector.broadcast %cst_60 : f32 to vector<2x128xf32>
    %211 = arith.addf %210, %209 : vector<2x128xf32>
    %212 = arith.divf %210, %211 : vector<2x128xf32>
    %213 = arith.mulf %204, %181 : vector<2x128xf32>
    %214 = arith.mulf %198, %206 : vector<2x128xf32>
    %215 = arith.addf %213, %214 : vector<2x128xf32>
    %216 = math.tanh %215 : vector<2x128xf32>
    %217 = arith.mulf %212, %216 : vector<2x128xf32>
    %218 = arith.index_cast %c5_i32 : i32 to index
    %c0_61 = arith.constant 0 : index
    %c0_62 = arith.constant 0 : index
    %219 = vector.load %arg10[%218, %c0_61, %c0_62] : memref<8x2x128xf32, #tpu.memory_space<vmem>>, vector<1x2x128xf32>
    %220 = vector.shape_cast %219 : vector<1x2x128xf32> to vector<2x128xf32>
    %221 = vector.shape_cast %217 : vector<2x128xf32> to vector<1x2x128xf32>
    tpu.vector_store %arg10[%218, %c0_61, %c0_62], %221 {strides = array<i32>} : memref<8x2x128xf32, #tpu.memory_space<vmem>>, vector<1x2x128xf32>,
    %c6_i32 = arith.constant 6 : i32
    %cst_63 = arith.constant dense<0.000000e+00> : vector<2x512xf32>
    %222 = tpu.matmul %217, %15, %cst_63 {dimension_numbers = #tpu.dot_dimension_numbers<[1], [0], [0], [1], [0, 0, 1, 1], [], []>} : vector<2x128xf32>, vector<128x512xf32>, vector<2x512xf32> -> vector<2x512xf32>
    %c2_i32_64 = arith.constant 2 : i32
    %223 = arith.muli %c6_i32, %c2_i32_64 : i32
    %224 = arith.index_cast %223 : i32 to index
    %c0_65 = arith.constant 0 : index
    %225 = vector.load %arg9[%224, %c0_65] : memref<16x512xf32, #tpu.memory_space<vmem>>, vector<2x512xf32>
    %226 = arith.addf %222, %225 : vector<2x512xf32>
    %227 = vector.extract_strided_slice %226 {offsets = [0, 0], sizes = [2, 128], strides = [1, 1]} : vector<2x512xf32> to vector<2x128xf32>
    %228 = arith.negf %227 : vector<2x128xf32>
    %229 = math.exp %228 : vector<2x128xf32>
    %cst_66 = arith.constant 1.000000e+00 : f32
    %230 = vector.broadcast %cst_66 : f32 to vector<2x128xf32>
    %231 = arith.addf %230, %229 : vector<2x128xf32>
    %232 = arith.divf %230, %231 : vector<2x128xf32>
    %233 = vector.extract_strided_slice %226 {offsets = [0, 128], sizes = [2, 128], strides = [1, 1]} : vector<2x512xf32> to vector<2x128xf32>
    %234 = arith.negf %233 : vector<2x128xf32>
    %235 = math.exp %234 : vector<2x128xf32>
    %cst_67 = arith.constant 1.000000e+00 : f32
    %236 = vector.broadcast %cst_67 : f32 to vector<2x128xf32>
    %237 = arith.addf %236, %235 : vector<2x128xf32>
    %238 = arith.divf %236, %237 : vector<2x128xf32>
    %239 = vector.extract_strided_slice %226 {offsets = [0, 256], sizes = [2, 128], strides = [1, 1]} : vector<2x512xf32> to vector<2x128xf32>
    %240 = math.tanh %239 : vector<2x128xf32>
    %241 = vector.extract_strided_slice %226 {offsets = [0, 384], sizes = [2, 128], strides = [1, 1]} : vector<2x512xf32> to vector<2x128xf32>
    %242 = arith.negf %241 : vector<2x128xf32>
    %243 = math.exp %242 : vector<2x128xf32>
    %cst_68 = arith.constant 1.000000e+00 : f32
    %244 = vector.broadcast %cst_68 : f32 to vector<2x128xf32>
    %245 = arith.addf %244, %243 : vector<2x128xf32>
    %246 = arith.divf %244, %245 : vector<2x128xf32>
    %247 = arith.mulf %238, %215 : vector<2x128xf32>
    %248 = arith.mulf %232, %240 : vector<2x128xf32>
    %249 = arith.addf %247, %248 : vector<2x128xf32>
    %250 = math.tanh %249 : vector<2x128xf32>
    %251 = arith.mulf %246, %250 : vector<2x128xf32>
    %252 = arith.index_cast %c6_i32 : i32 to index
    %c0_69 = arith.constant 0 : index
    %c0_70 = arith.constant 0 : index
    %253 = vector.load %arg10[%252, %c0_69, %c0_70] : memref<8x2x128xf32, #tpu.memory_space<vmem>>, vector<1x2x128xf32>
    %254 = vector.shape_cast %253 : vector<1x2x128xf32> to vector<2x128xf32>
    %255 = vector.shape_cast %251 : vector<2x128xf32> to vector<1x2x128xf32>
    tpu.vector_store %arg10[%252, %c0_69, %c0_70], %255 {strides = array<i32>} : memref<8x2x128xf32, #tpu.memory_space<vmem>>, vector<1x2x128xf32>,
    %c7_i32 = arith.constant 7 : i32
    %cst_71 = arith.constant dense<0.000000e+00> : vector<2x512xf32>
    %256 = tpu.matmul %251, %15, %cst_71 {dimension_numbers = #tpu.dot_dimension_numbers<[1], [0], [0], [1], [0, 0, 1, 1], [], []>} : vector<2x128xf32>, vector<128x512xf32>, vector<2x512xf32> -> vector<2x512xf32>
    %c2_i32_72 = arith.constant 2 : i32
    %257 = arith.muli %c7_i32, %c2_i32_72 : i32
    %258 = arith.index_cast %257 : i32 to index
    %c0_73 = arith.constant 0 : index
    %259 = vector.load %arg9[%258, %c0_73] : memref<16x512xf32, #tpu.memory_space<vmem>>, vector<2x512xf32>
    %260 = arith.addf %256, %259 : vector<2x512xf32>
    %261 = vector.extract_strided_slice %260 {offsets = [0, 0], sizes = [2, 128], strides = [1, 1]} : vector<2x512xf32> to vector<2x128xf32>
    %262 = arith.negf %261 : vector<2x128xf32>
    %263 = math.exp %262 : vector<2x128xf32>
    %cst_74 = arith.constant 1.000000e+00 : f32
    %264 = vector.broadcast %cst_74 : f32 to vector<2x128xf32>
    %265 = arith.addf %264, %263 : vector<2x128xf32>
    %266 = arith.divf %264, %265 : vector<2x128xf32>
    %267 = vector.extract_strided_slice %260 {offsets = [0, 128], sizes = [2, 128], strides = [1, 1]} : vector<2x512xf32> to vector<2x128xf32>
    %268 = arith.negf %267 : vector<2x128xf32>
    %269 = math.exp %268 : vector<2x128xf32>
    %cst_75 = arith.constant 1.000000e+00 : f32
    %270 = vector.broadcast %cst_75 : f32 to vector<2x128xf32>
    %271 = arith.addf %270, %269 : vector<2x128xf32>
    %272 = arith.divf %270, %271 : vector<2x128xf32>
    %273 = vector.extract_strided_slice %260 {offsets = [0, 256], sizes = [2, 128], strides = [1, 1]} : vector<2x512xf32> to vector<2x128xf32>
    %274 = math.tanh %273 : vector<2x128xf32>
    %275 = vector.extract_strided_slice %260 {offsets = [0, 384], sizes = [2, 128], strides = [1, 1]} : vector<2x512xf32> to vector<2x128xf32>
    %276 = arith.negf %275 : vector<2x128xf32>
    %277 = math.exp %276 : vector<2x128xf32>
    %cst_76 = arith.constant 1.000000e+00 : f32
    %278 = vector.broadcast %cst_76 : f32 to vector<2x128xf32>
    %279 = arith.addf %278, %277 : vector<2x128xf32>
    %280 = arith.divf %278, %279 : vector<2x128xf32>
    %281 = arith.mulf %272, %249 : vector<2x128xf32>
    %282 = arith.mulf %266, %274 : vector<2x128xf32>
    %283 = arith.addf %281, %282 : vector<2x128xf32>
    %284 = math.tanh %283 : vector<2x128xf32>
    %285 = arith.mulf %280, %284 : vector<2x128xf32>
    %286 = arith.index_cast %c7_i32 : i32 to index
    %c0_77 = arith.constant 0 : index
    %c0_78 = arith.constant 0 : index
    %287 = vector.load %arg10[%286, %c0_77, %c0_78] : memref<8x2x128xf32, #tpu.memory_space<vmem>>, vector<1x2x128xf32>
    %288 = vector.shape_cast %287 : vector<1x2x128xf32> to vector<2x128xf32>
    %289 = vector.shape_cast %285 : vector<2x128xf32> to vector<1x2x128xf32>
    tpu.vector_store %arg10[%286, %c0_77, %c0_78], %289 {strides = array<i32>} : memref<8x2x128xf32, #tpu.memory_space<vmem>>, vector<1x2x128xf32>,
    %c8_i32 = arith.constant 8 : i32
    %c0_79 = arith.constant 0 : index
    %c0_80 = arith.constant 0 : index
    %c0_81 = arith.constant 0 : index
    %290 = vector.load %arg10[%c0_79, %c0_80, %c0_81] : memref<8x2x128xf32, #tpu.memory_space<vmem>>, vector<8x2x128xf32>
    %291 = vector.extract_strided_slice %290 {offsets = [0, 0, 0], sizes = [8, 1, 128], strides = [1, 1, 1]} : vector<8x2x128xf32> to vector<8x1x128xf32>
    %292 = vector.shape_cast %291 : vector<8x1x128xf32> to vector<8x128xf32>
    %c0_82 = arith.constant 0 : index
    %c0_83 = arith.constant 0 : index
    %c0_84 = arith.constant 0 : index
    %293 = vector.load %arg6[%c0_82, %c0_83, %c0_84] : memref<2x8x128xf32, #tpu.memory_space<vmem>>, vector<1x8x128xf32>
    %294 = vector.shape_cast %293 : vector<1x8x128xf32> to vector<8x128xf32>
    %295 = vector.shape_cast %292 : vector<8x128xf32> to vector<1x8x128xf32>
    tpu.vector_store %arg6[%c0_82, %c0_83, %c0_84], %295 {strides = array<i32>} : memref<2x8x128xf32, #tpu.memory_space<vmem>>, vector<1x8x128xf32>,
    %296 = vector.extract_strided_slice %290 {offsets = [0, 1, 0], sizes = [8, 1, 128], strides = [1, 1, 1]} : vector<8x2x128xf32> to vector<8x1x128xf32>
    %297 = vector.shape_cast %296 : vector<8x1x128xf32> to vector<8x128xf32>
    %c1 = arith.constant 1 : index
    %c0_85 = arith.constant 0 : index
    %c0_86 = arith.constant 0 : index
    %298 = vector.load %arg6[%c1, %c0_85, %c0_86] : memref<2x8x128xf32, #tpu.memory_space<vmem>>, vector<1x8x128xf32>
    %299 = vector.shape_cast %298 : vector<1x8x128xf32> to vector<8x128xf32>
    %300 = vector.shape_cast %297 : vector<8x128xf32> to vector<1x8x128xf32>
    tpu.vector_store %arg6[%c1, %c0_85, %c0_86], %300 {strides = array<i32>} : memref<2x8x128xf32, #tpu.memory_space<vmem>>, vector<1x8x128xf32>,
    %301 = vector.shape_cast %285 : vector<2x128xf32> to vector<2x1x128xf32>
    %c0_87 = arith.constant 0 : index
    %c0_88 = arith.constant 0 : index
    %c0_89 = arith.constant 0 : index
    %302 = vector.load %arg7[%c0_87, %c0_88, %c0_89] : memref<2x1x128xf32, #tpu.memory_space<vmem>>, vector<2x1x128xf32>
    tpu.vector_store %arg7[%c0_87, %c0_88, %c0_89], %301 {strides = array<i32>} : memref<2x1x128xf32, #tpu.memory_space<vmem>>, vector<2x1x128xf32>,
    %303 = vector.shape_cast %283 : vector<2x128xf32> to vector<2x1x128xf32>
    %c0_90 = arith.constant 0 : index
    %c0_91 = arith.constant 0 : index
    %c0_92 = arith.constant 0 : index
    %304 = vector.load %arg8[%c0_90, %c0_91, %c0_92] : memref<2x1x128xf32, #tpu.memory_space<vmem>>, vector<2x1x128xf32>
    tpu.vector_store %arg8[%c0_90, %c0_91, %c0_92], %303 {strides = array<i32>} : memref<2x1x128xf32, #tpu.memory_space<vmem>>, vector<2x1x128xf32>,
    return
  }
  func.func @transform_0(%arg0: i32) -> (i32, i32, i32) {
    %c0_i32 = arith.constant 0 : i32
    %c0_i32_0 = arith.constant 0 : i32
    %c0_i32_1 = arith.constant 0 : i32
    return %arg0, %c0_i32, %c0_i32_0 : i32, i32, i32
  }
  func.func @transform_1(%arg0: i32) -> (i32, i32) {
    %c0_i32 = arith.constant 0 : i32
    %c0_i32_0 = arith.constant 0 : i32
    %c0_i32_1 = arith.constant 0 : i32
    return %c0_i32, %c0_i32_0 : i32, i32
  }
  func.func @transform_2(%arg0: i32) -> (i32, i32) {
    %c0_i32 = arith.constant 0 : i32
    %c0_i32_0 = arith.constant 0 : i32
    %c0_i32_1 = arith.constant 0 : i32
    return %c0_i32, %c0_i32_0 : i32, i32
  }
  func.func @transform_3(%arg0: i32) -> (i32, i32) {
    %c0_i32 = arith.constant 0 : i32
    %c0_i32_0 = arith.constant 0 : i32
    %c0_i32_1 = arith.constant 0 : i32
    return %c0_i32, %c0_i32_0 : i32, i32
  }
  func.func @transform_4(%arg0: i32) -> (i32, i32) {
    %c0_i32 = arith.constant 0 : i32
    %c0_i32_0 = arith.constant 0 : i32
    %c0_i32_1 = arith.constant 0 : i32
    return %c0_i32, %c0_i32_0 : i32, i32
  }
  func.func @transform_5(%arg0: i32) -> (i32, i32, i32) {
    %c0_i32 = arith.constant 0 : i32
    %c0_i32_0 = arith.constant 0 : i32
    %c0_i32_1 = arith.constant 0 : i32
    return %arg0, %c0_i32, %c0_i32_0 : i32, i32, i32
  }
  func.func @transform_6(%arg0: i32) -> (i32, i32, i32) {
    %c0_i32 = arith.constant 0 : i32
    %c0_i32_0 = arith.constant 0 : i32
    %c0_i32_1 = arith.constant 0 : i32
    return %arg0, %c0_i32, %c0_i32_0 : i32, i32, i32
  }
  func.func @transform_7(%arg0: i32) -> (i32, i32, i32) {
    %c0_i32 = arith.constant 0 : i32
    %c0_i32_0 = arith.constant 0 : i32
    %c0_i32_1 = arith.constant 0 : i32
    return %arg0, %c0_i32, %c0_i32_0 : i32, i32, i32
  }
}

</mosaic_0001>

<llo_original>
// kernel: encoder_forward.1
$region0: #{encoder_forward.1}
  #allocation0 [shape = 'u32[]', space=smem, size = 0x4, offset = 0x4, fixed_abs, tag = 'smem constant byte address 0x4 - core index']
  #allocation1 [shape = 'u32[144,128]{1,0:T(1,128)}', space=vmem, size = 0x12000, scoped, tag = 'internal scratch']
  #allocation2 [shape = 'f32[16,512]{1,0:T(8,128)}', space=vmem, size = 0x8000, scoped, tag = 'scratch operand']
  #allocation3 [shape = 'f32[8,2,128]{2,1,0:T(2,128)}', space=vmem, size = 0x2000, scoped, tag = 'scratch operand']
  %s0 = inlined_call_operand.vmem [shape: s32[1,16,1], index: 0, kind: input, shape index: {}]
  %s1 = inlined_call_operand.vmem [shape: f32[16,32], index: 1, kind: input, shape index: {}]
  %s2 = inlined_call_operand.vmem [shape: f32[32,512], index: 2, kind: input, shape index: {}]
  %s3 = inlined_call_operand.vmem [shape: f32[128,512], index: 3, kind: input, shape index: {}]
  %s4 = inlined_call_operand.vmem [shape: f32[1,512], index: 4, kind: input, shape index: {}]
  %s5 = inlined_call_operand.hbm [shape: f32[2,8,128], index: 5, kind: output, shape index: {0}]
  %s6 = inlined_call_operand.hbm [shape: f32[2,1,128], index: 6, kind: output, shape index: {1}]
  %s7 = inlined_call_operand.hbm [shape: f32[2,1,128], index: 7, kind: output, shape index: {2}]
  %8 = xla_tuple %s5, %s6, %s7
  %s9 = sld [smem:[#allocation0]]
  $region46: #{encoder_forward.1} parent=0
    _
  %s11 = ssub.s32 1, %s9
  %s12 = scalar_select 0, %s11, %s9
  $region1: #{encoder_forward.1} parent=0
    #allocation4 [shape = 'u8[8192]{0}', space=vmem, size = 0x2000, scoped, tag = 'output window, operand 0, single buffered']
    #allocation5 [shape = 's32[1]{0}', space=sflag, size = 0x4, scoped, tag = 'scoped memory for encoder_forward.1']
    #allocation6 [shape = 'u8[1024]{0}', space=vmem, size = 0x400, scoped, tag = 'output window, operand 1, single buffered']
    #allocation7 [shape = 's32[1]{0}', space=sflag, size = 0x4, scoped, tag = 'scoped memory for encoder_forward.1']
    #allocation8 [shape = 'u8[1024]{0}', space=vmem, size = 0x400, scoped, tag = 'output window, operand 2, single buffered']
    %13 = vsyncpa [#allocation5], 0
    %14 = vsyncpa [#allocation7], 0
    // Predicated region
    $region2: #{encoder_forward.1} parent=1 // pred_check
      _
    $region3: #{encoder_forward.1} parent=1 // pred_check_branch
      %16 = sbr.rel (0) target = $region5
    $region4: #{encoder_forward.1} parent=1 // pred_region
      _
    $region5: #{encoder_forward.1} parent=1 // pred_fallthru
      _
    // Predicated region
    $region6: #{encoder_forward.1} parent=1 // pred_check
      _
    $region7: #{encoder_forward.1} parent=1 // pred_check_branch
      %18 = sbr.rel (0) target = $region9
    $region8: #{encoder_forward.1} parent=1 // pred_region
      _
    $region9: #{encoder_forward.1} parent=1 // pred_fallthru
      _
    // Predicated region
    $region10: #{encoder_forward.1} parent=1 // pred_check
      _
    $region11: #{encoder_forward.1} parent=1 // pred_check_branch
      %20 = sbr.rel (0) target = $region13
    $region12: #{encoder_forward.1} parent=1 // pred_region
      _
    $region13: #{encoder_forward.1} parent=1 // pred_fallthru
      _
    // Predicated region
    $region14: #{encoder_forward.1} parent=1 // pred_check
      _
    $region15: #{encoder_forward.1} parent=1 // pred_check_branch
      %22 = sbr.rel (0) target = $region17
    $region16: #{encoder_forward.1} parent=1 // pred_region
      _
    $region17: #{encoder_forward.1} parent=1 // pred_fallthru
      _
    // Predicated region
    $region18: #{encoder_forward.1} parent=1 // pred_check
      _
    $region19: #{encoder_forward.1} parent=1 // pred_check_branch
      %24 = sbr.rel (0) target = $region21
    $region20: #{encoder_forward.1} parent=1 // pred_region
      _
    $region21: #{encoder_forward.1} parent=1 // pred_fallthru
      _
    %v25 = vld [vmem:[%s1] sm:$0xff]
    %v26 = vld [vmem:[%s1 + $0x8] sm:$0xff]
    %v27 = vld [vmem:[%s2] sm:$0xff]
    %v28 = vld [vmem:[%s2 + $0x8] sm:$0xff]
    %v29 = vld [vmem:[%s2 + $0x10] sm:$0xff]
    %v30 = vld [vmem:[%s2 + $0x18] sm:$0xff]
    %v31 = vld [vmem:[%s2 + $0x20] sm:$0xff]
    %v32 = vld [vmem:[%s2 + $0x28] sm:$0xff]
    %v33 = vld [vmem:[%s2 + $0x30] sm:$0xff]
    %v34 = vld [vmem:[%s2 + $0x38] sm:$0xff]
    %v35 = vld [vmem:[%s2 + $0x40] sm:$0xff]
    %v36 = vld [vmem:[%s2 + $0x48] sm:$0xff]
    %v37 = vld [vmem:[%s2 + $0x50] sm:$0xff]
    %v38 = vld [vmem:[%s2 + $0x58] sm:$0xff]
    %v39 = vld [vmem:[%s2 + $0x60] sm:$0xff]
    %v40 = vld [vmem:[%s2 + $0x68] sm:$0xff]
    %v41 = vld [vmem:[%s2 + $0x70] sm:$0xff]
    %v42 = vld [vmem:[%s2 + $0x78] sm:$0xff]
    %v43 = vld [vmem:[%s4] sm:$0xf]
    %v45 = vlaneseq
    %v46 = vshrl.u32 %v45, 7
    %v47 = vsub.s32 0, %v46
    %v48 = vrot.slane %v43, %v47
    %v49 = vlaneseq
    %v50 = vshrl.u32 %v49, 7
    %v51 = vsub.s32 1, %v50
    %v52 = vrot.slane %v43, %v51
    %v53 = vlaneseq
    %v54 = vshrl.u32 %v53, 7
    %v55 = vsub.s32 2, %v54
    %v56 = vrot.slane %v43, %v55
    %v57 = vlaneseq
    %v58 = vshrl.u32 %v57, 7
    %v59 = vsub.s32 3, %v58
    %v60 = vrot.slane %v43, %v59
    %vm65 = vcmask 261120
    %v67 = vsel %vm65, %v25, 0
    %v70 = vsel %vm65, %v26, 0
    %72 = vmatprep.subr.mxu0 %v28
    %73 = vmatpush1.msra.mxu0 %v27
    %74 = vmatprep.subr.mxu0 %v32
    %75 = vmatpush1.msra.mxu0 %v31
    %76 = vmatprep.subr.mxu0 %v36
    %77 = vmatpush1.msra.mxu0 %v35
    %78 = vmatprep.subr.mxu0 %v40
    %79 = vmatpush1.msra.mxu0 %v39
    %80 = vmatprep.subr.mxu0 0.0
    %81 = vmatpush1.msra.mxu0 0.0
    %82 = vmatprep.subr.mxu0 0.0
    %83 = vmatpush1.msra.mxu0 0.0
    %84 = vmatprep.subr.mxu0 0.0
    %85 = vmatpush1.msra.mxu0 0.0
    %86 = vmatprep.subr.mxu0 0.0
    %87 = vmatpush1.msra.mxu0 0.0
    %88 = vmatprep.subr.mxu0 0.0
    %89 = vmatpush1.msra.mxu0 0.0
    %90 = vmatprep.subr.mxu0 0.0
    %91 = vmatpush1.msra.mxu0 0.0
    %92 = vmatprep.subr.mxu0 0.0
    %93 = vmatpush1.msra.mxu0 0.0
    %94 = vmatprep.subr.mxu0 0.0
    %95 = vmatpush1.msra.mxu0 0.0
    %96 = vmatprep.subr.mxu0 0.0
    %97 = vmatpush1.msra.mxu0 0.0
    %98 = vmatprep.subr.mxu0 0.0
    %99 = vmatpush1.msra.mxu0 0.0
    %100 = vmatprep.subr.mxu0 0.0
    %101 = vmatpush1.msra.mxu0 0.0
    %102 = vmatprep.subr.mxu0 0.0
    %103 = vmatpush1.msra.mxu0 0.0
    %104 = vmatprep.subr.mxu0 0.0
    %105 = vmatpush1.msra.mxu0 0.0
    %106 = vmatprep.subr.mxu0 0.0
    %107 = vmatpush1.msra.mxu0 0.0
    %108 = vmatprep.subr.mxu0 0.0
    %109 = vmatpush1.msra.mxu0 0.0
    %110 = vmatprep.subr.mxu0 0.0
    %111 = vmatpush1.msra.mxu0 0.0
    %112 = vmatprep.subr.mxu0 0.0
    %113 = vmatpush1.msra.mxu0 0.0
    %114 = vmatprep.subr.mxu0 0.0
    %115 = vmatpush1.msra.mxu0 0.0
    %116 = vmatprep.subr.mxu0 0.0
    %117 = vmatpush1.msra.mxu0 0.0
    %118 = vmatprep.subr.mxu0 0.0
    %119 = vmatpush1.msra.mxu0 0.0
    %120 = vmatprep.subr.mxu0 0.0
    %121 = vmatpush1.msra.mxu0 0.0
    %122 = vmatprep.subr.mxu0 0.0
    %123 = vmatpush1.msra.mxu0 0.0
    %124 = vmatprep.subr.mxu0 0.0
    %125 = vmatpush1.msra.mxu0 0.0
    %126 = vmatprep.subr.mxu0 0.0
    %127 = vmatpush1.msra.mxu0 0.0
    %128 = vmatprep.subr.mxu0 0.0
    %129 = vmatpush1.msra.mxu0 0.0
    %130 = vmatprep.subr.mxu0 0.0
    %131 = vmatpush1.msra.mxu0 0.0
    %132 = vmatprep.subr.mxu0 0.0
    %133 = vmatpush1.msra.mxu0 0.0
    %134 = vmatprep.subr.mxu0 0.0
    %135 = vmatpush1.msra.mxu0 0.0
    %136 = vmatprep.mubr.f32.mxu0 0.0
    %137 = vmatmul.mubr.f32.gmra.mrb[0].mxu0 %v67
    %v138 = vpop.f32.mrb[0].mxu0
    %v139 = vadd.f32 %v48, %v138
    %v140 = vpop.f32.mrb[0].mxu0
    %v141 = vadd.f32 %v52, %v140
    %142 = vmatprep.mubr.f32.mxu0 0.0
    %143 = vmatmul.mubr.f32.gmra.mrb[0].mxu0 %v70
    %v144 = vpop.f32.mrb[0].mxu0
    %v145 = vadd.f32 %v48, %v144
    %v146 = vpop.f32.mrb[0].mxu0
    %v147 = vadd.f32 %v52, %v146
    %148 = vdwg.mxu0
    %149 = vmatprep.subr.mxu0 %v30
    %150 = vmatpush1.msra.mxu0 %v29
    %151 = vmatprep.subr.mxu0 %v34
    %152 = vmatpush1.msra.mxu0 %v33
    %153 = vmatprep.subr.mxu0 %v38
    %154 = vmatpush1.msra.mxu0 %v37
    %155 = vmatprep.subr.mxu0 %v42
    %156 = vmatpush1.msra.mxu0 %v41
    %157 = vmatprep.subr.mxu0 0.0
    %158 = vmatpush1.msra.mxu0 0.0
    %159 = vmatprep.subr.mxu0 0.0
    %160 = vmatpush1.msra.mxu0 0.0
    %161 = vmatprep.subr.mxu0 0.0
    %162 = vmatpush1.msra.mxu0 0.0
    %163 = vmatprep.subr.mxu0 0.0
    %164 = vmatpush1.msra.mxu0 0.0
    %165 = vmatprep.subr.mxu0 0.0
    %166 = vmatpush1.msra.mxu0 0.0
    %167 = vmatprep.subr.mxu0 0.0
    %168 = vmatpush1.msra.mxu0 0.0
    %169 = vmatprep.subr.mxu0 0.0
    %170 = vmatpush1.msra.mxu0 0.0
    %171 = vmatprep.subr.mxu0 0.0
    %172 = vmatpush1.msra.mxu0 0.0
    %173 = vmatprep.subr.mxu0 0.0
    %174 = vmatpush1.msra.mxu0 0.0
    %175 = vmatprep.subr.mxu0 0.0
    %176 = vmatpush1.msra.mxu0 0.0
    %177 = vmatprep.subr.mxu0 0.0
    %178 = vmatpush1.msra.mxu0 0.0
    %179 = vmatprep.subr.mxu0 0.0
    %180 = vmatpush1.msra.mxu0 0.0
    %181 = vmatprep.subr.mxu0 0.0
    %182 = vmatpush1.msra.mxu0 0.0
    %183 = vmatprep.subr.mxu0 0.0
    %184 = vmatpush1.msra.mxu0 0.0
    %185 = vmatprep.subr.mxu0 0.0
    %186 = vmatpush1.msra.mxu0 0.0
    %187 = vmatprep.subr.mxu0 0.0
    %188 = vmatpush1.msra.mxu0 0.0
    %189 = vmatprep.subr.mxu0 0.0
    %190 = vmatpush1.msra.mxu0 0.0
    %191 = vmatprep.subr.mxu0 0.0
    %192 = vmatpush1.msra.mxu0 0.0
    %193 = vmatprep.subr.mxu0 0.0
    %194 = vmatpush1.msra.mxu0 0.0
    %195 = vmatprep.subr.mxu0 0.0
    %196 = vmatpush1.msra.mxu0 0.0
    %197 = vmatprep.subr.mxu0 0.0
    %198 = vmatpush1.msra.mxu0 0.0
    %199 = vmatprep.subr.mxu0 0.0
    %200 = vmatpush1.msra.mxu0 0.0
    %201 = vmatprep.subr.mxu0 0.0
    %202 = vmatpush1.msra.mxu0 0.0
    %203 = vmatprep.subr.mxu0 0.0
    %204 = vmatpush1.msra.mxu0 0.0
    %205 = vmatprep.subr.mxu0 0.0
    %206 = vmatpush1.msra.mxu0 0.0
    %207 = vmatprep.subr.mxu0 0.0
    %208 = vmatpush1.msra.mxu0 0.0
    %209 = vmatprep.subr.mxu0 0.0
    %210 = vmatpush1.msra.mxu0 0.0
    %211 = vmatprep.subr.mxu0 0.0
    %212 = vmatpush1.msra.mxu0 0.0
    %213 = vmatprep.mubr.f32.mxu0 0.0
    %214 = vmatmul.mubr.f32.gmra.mrb[0].mxu0 %v67
    %v215 = vpop.f32.mrb[0].mxu0
    %v216 = vadd.f32 %v56, %v215
    %v217 = vpop.f32.mrb[0].mxu0
    %v218 = vadd.f32 %v60, %v217
    %219 = vmatprep.mubr.f32.mxu0 0.0
    %220 = vmatmul.mubr.f32.gmra.mrb[0].mxu0 %v70
    %v221 = vpop.f32.mrb[0].mxu0
    %v222 = vadd.f32 %v56, %v221
    %v223 = vpop.f32.mrb[0].mxu0
    %v224 = vadd.f32 %v60, %v223
    %225 = vdwg.mxu0
    %v226 = vld [vmem:[%s0] sm:$0xff]
    %v227 = vld [vmem:[%s0 + $0x8] sm:$0xff]
    %v228 = vlaneseq
    %v229 = vand.u32 %v228, 127
    %230 = vset.pattern.permute.xlu0 0
    %231 = vperm.xlu0 %230, %v226
    %v232 = vpop.permute.xlu0 %231
    %233 = vset.pattern.permute.xlu0 0
    %234 = vperm.xlu0 %233, %v227
    %v235 = vpop.permute.xlu0 %234
    %vm236 = vcmp.eq.s32.totalorder %v232, %v229
    %vm237 = vcmp.eq.s32.totalorder %v235, %v229
    %v238 = vsel %vm236, 1, 0
    %v239 = vsel %vm237, 1, 0
    %v240 = vcvt.s32.f32 %v238
    %v241 = vcvt.s32.f32 %v239
    %vm242 = vcmask 130048
    %v244 = vsel %vm242, %v240, 0
    %v247 = vsel %vm242, %v241, 0
    %249 = vmatprep.subr.mxu0 %v141
    %250 = vmatpush1.msra.mxu0 %v139
    %251 = vmatprep.subr.mxu0 %v147
    %252 = vmatpush1.msra.mxu0 %v145
    %253 = vmatprep.subr.mxu0 0.0
    %254 = vmatpush1.msra.mxu0 0.0
    %255 = vmatprep.subr.mxu0 0.0
    %256 = vmatpush1.msra.mxu0 0.0
    %257 = vmatprep.subr.mxu0 0.0
    %258 = vmatpush1.msra.mxu0 0.0
    %259 = vmatprep.subr.mxu0 0.0
    %260 = vmatpush1.msra.mxu0 0.0
    %261 = vmatprep.subr.mxu0 0.0
    %262 = vmatpush1.msra.mxu0 0.0
    %263 = vmatprep.subr.mxu0 0.0
    %264 = vmatpush1.msra.mxu0 0.0
    %265 = vmatprep.subr.mxu0 0.0
    %266 = vmatpush1.msra.mxu0 0.0
    %267 = vmatprep.subr.mxu0 0.0
    %268 = vmatpush1.msra.mxu0 0.0
    %269 = vmatprep.subr.mxu0 0.0
    %270 = vmatpush1.msra.mxu0 0.0
    %271 = vmatprep.subr.mxu0 0.0
    %272 = vmatpush1.msra.mxu0 0.0
    %273 = vmatprep.subr.mxu0 0.0
    %274 = vmatpush1.msra.mxu0 0.0
    %275 = vmatprep.subr.mxu0 0.0
    %276 = vmatpush1.msra.mxu0 0.0
    %277 = vmatprep.subr.mxu0 0.0
    %278 = vmatpush1.msra.mxu0 0.0
    %279 = vmatprep.subr.mxu0 0.0
    %280 = vmatpush1.msra.mxu0 0.0
    %281 = vmatprep.subr.mxu0 0.0
    %282 = vmatpush1.msra.mxu0 0.0
    %283 = vmatprep.subr.mxu0 0.0
    %284 = vmatpush1.msra.mxu0 0.0
    %285 = vmatprep.subr.mxu0 0.0
    %286 = vmatpush1.msra.mxu0 0.0
    %287 = vmatprep.subr.mxu0 0.0
    %288 = vmatpush1.msra.mxu0 0.0
    %289 = vmatprep.subr.mxu0 0.0
    %290 = vmatpush1.msra.mxu0 0.0
    %291 = vmatprep.subr.mxu0 0.0
    %292 = vmatpush1.msra.mxu0 0.0
    %293 = vmatprep.subr.mxu0 0.0
    %294 = vmatpush1.msra.mxu0 0.0
    %295 = vmatprep.subr.mxu0 0.0
    %296 = vmatpush1.msra.mxu0 0.0
    %297 = vmatprep.subr.mxu0 0.0
    %298 = vmatpush1.msra.mxu0 0.0
    %299 = vmatprep.subr.mxu0 0.0
    %300 = vmatpush1.msra.mxu0 0.0
    %301 = vmatprep.subr.mxu0 0.0
    %302 = vmatpush1.msra.mxu0 0.0
    %303 = vmatprep.subr.mxu0 0.0
    %304 = vmatpush1.msra.mxu0 0.0
    %305 = vmatprep.subr.mxu0 0.0
    %306 = vmatpush1.msra.mxu0 0.0
    %307 = vmatprep.subr.mxu0 0.0
    %308 = vmatpush1.msra.mxu0 0.0
    %309 = vmatprep.subr.mxu0 0.0
    %310 = vmatpush1.msra.mxu0 0.0
    %311 = vmatprep.subr.mxu0 0.0
    %312 = vmatpush1.msra.mxu0 0.0
    %313 = vmatprep.mubr.f32.mxu0 0.0
    %314 = vmatmul.mubr.f32.gmra.mrb[0].mxu0 %v244
    %v315 = vpop.f32.mrb[0].mxu0
    %v316 = vadd.f32 0.0, %v315
    %v317 = vpop.f32.mrb[0].mxu0
    %v318 = vadd.f32 0.0, %v317
    %319 = vmatprep.mubr.f32.mxu0 0.0
    %320 = vmatmul.mubr.f32.gmra.mrb[0].mxu0 %v247
    %v321 = vpop.f32.mrb[0].mxu0
    %v322 = vadd.f32 0.0, %v321
    %v323 = vpop.f32.mrb[0].mxu0
    %v324 = vadd.f32 0.0, %v323
    %325 = vdwg.mxu0
    %326 = vmatprep.subr.mxu0 %v218
    %327 = vmatpush1.msra.mxu0 %v216
    %328 = vmatprep.subr.mxu0 %v224
    %329 = vmatpush1.msra.mxu0 %v222
    %330 = vmatprep.subr.mxu0 0.0
    %331 = vmatpush1.msra.mxu0 0.0
    %332 = vmatprep.subr.mxu0 0.0
    %333 = vmatpush1.msra.mxu0 0.0
    %334 = vmatprep.subr.mxu0 0.0
    %335 = vmatpush1.msra.mxu0 0.0
    %336 = vmatprep.subr.mxu0 0.0
    %337 = vmatpush1.msra.mxu0 0.0
    %338 = vmatprep.subr.mxu0 0.0
    %339 = vmatpush1.msra.mxu0 0.0
    %340 = vmatprep.subr.mxu0 0.0
    %341 = vmatpush1.msra.mxu0 0.0
    %342 = vmatprep.subr.mxu0 0.0
    %343 = vmatpush1.msra.mxu0 0.0
    %344 = vmatprep.subr.mxu0 0.0
    %345 = vmatpush1.msra.mxu0 0.0
    %346 = vmatprep.subr.mxu0 0.0
    %347 = vmatpush1.msra.mxu0 0.0
    %348 = vmatprep.subr.mxu0 0.0
    %349 = vmatpush1.msra.mxu0 0.0
    %350 = vmatprep.subr.mxu0 0.0
    %351 = vmatpush1.msra.mxu0 0.0
    %352 = vmatprep.subr.mxu0 0.0
    %353 = vmatpush1.msra.mxu0 0.0
    %354 = vmatprep.subr.mxu0 0.0
    %355 = vmatpush1.msra.mxu0 0.0
    %356 = vmatprep.subr.mxu0 0.0
    %357 = vmatpush1.msra.mxu0 0.0
    %358 = vmatprep.subr.mxu0 0.0
    %359 = vmatpush1.msra.mxu0 0.0
    %360 = vmatprep.subr.mxu0 0.0
    %361 = vmatpush1.msra.mxu0 0.0
    %362 = vmatprep.subr.mxu0 0.0
    %363 = vmatpush1.msra.mxu0 0.0
    %364 = vmatprep.subr.mxu0 0.0
    %365 = vmatpush1.msra.mxu0 0.0
    %366 = vmatprep.subr.mxu0 0.0
    %367 = vmatpush1.msra.mxu0 0.0
    %368 = vmatprep.subr.mxu0 0.0
    %369 = vmatpush1.msra.mxu0 0.0
    %370 = vmatprep.subr.mxu0 0.0
    %371 = vmatpush1.msra.mxu0 0.0
    %372 = vmatprep.subr.mxu0 0.0
    %373 = vmatpush1.msra.mxu0 0.0
    %374 = vmatprep.subr.mxu0 0.0
    %375 = vmatpush1.msra.mxu0 0.0
    %376 = vmatprep.subr.mxu0 0.0
    %377 = vmatpush1.msra.mxu0 0.0
    %378 = vmatprep.subr.mxu0 0.0
    %379 = vmatpush1.msra.mxu0 0.0
    %380 = vmatprep.subr.mxu0 0.0
    %381 = vmatpush1.msra.mxu0 0.0
    %382 = vmatprep.subr.mxu0 0.0
    %383 = vmatpush1.msra.mxu0 0.0
    %384 = vmatprep.subr.mxu0 0.0
    %385 = vmatpush1.msra.mxu0 0.0
    %386 = vmatprep.subr.mxu0 0.0
    %387 = vmatpush1.msra.mxu0 0.0
    %388 = vmatprep.subr.mxu0 0.0
    %389 = vmatpush1.msra.mxu0 0.0
    %390 = vmatprep.mubr.f32.mxu0 0.0
    %391 = vmatmul.mubr.f32.gmra.mrb[0].mxu0 %v244
    %v392 = vpop.f32.mrb[0].mxu0
    %v393 = vadd.f32 0.0, %v392
    %v394 = vpop.f32.mrb[0].mxu0
    %v395 = vadd.f32 0.0, %v394
    %396 = vmatprep.mubr.f32.mxu0 0.0
    %397 = vmatmul.mubr.f32.gmra.mrb[0].mxu0 %v247
    %v398 = vpop.f32.mrb[0].mxu0
    %v399 = vadd.f32 0.0, %v398
    %v400 = vpop.f32.mrb[0].mxu0
    %v401 = vadd.f32 0.0, %v400
    %402 = vdwg.mxu0
    %403 = vst [vmem:[#allocation2] sm:$0xff] %v316
    %404 = vst [vmem:[#allocation2 + $0x8] sm:$0xff] %v318
    %405 = vst [vmem:[#allocation2 + $0x10] sm:$0xff] %v393
    %406 = vst [vmem:[#allocation2 + $0x18] sm:$0xff] %v395
    %407 = vst [vmem:[#allocation2 + $0x20] sm:$0xff] %v322
    %408 = vst [vmem:[#allocation2 + $0x28] sm:$0xff] %v324
    %409 = vst [vmem:[#allocation2 + $0x30] sm:$0xff] %v399
    %410 = vst [vmem:[#allocation2 + $0x38] sm:$0xff] %v401
    %v411 = vld [vmem:[%s3] sm:$0xff]
    %v412 = vld [vmem:[%s3 + $0x8] sm:$0xff]
    %v413 = vld [vmem:[%s3 + $0x10] sm:$0xff]
    %v414 = vld [vmem:[%s3 + $0x18] sm:$0xff]
    %v415 = vld [vmem:[%s3 + $0x20] sm:$0xff]
    %v416 = vld [vmem:[%s3 + $0x28] sm:$0xff]
    %v417 = vld [vmem:[%s3 + $0x30] sm:$0xff]
    %v418 = vld [vmem:[%s3 + $0x38] sm:$0xff]
    %v419 = vld [vmem:[%s3 + $0x40] sm:$0xff]
    %v420 = vld [vmem:[%s3 + $0x48] sm:$0xff]
    %v421 = vld [vmem:[%s3 + $0x50] sm:$0xff]
    %v422 = vld [vmem:[%s3 + $0x58] sm:$0xff]
    %v423 = vld [vmem:[%s3 + $0x60] sm:$0xff]
    %v424 = vld [vmem:[%s3 + $0x68] sm:$0xff]
    %v425 = vld [vmem:[%s3 + $0x70] sm:$0xff]
    %v426 = vld [vmem:[%s3 + $0x78] sm:$0xff]
    %v427 = vld [vmem:[%s3 + $0x80] sm:$0xff]
    %v428 = vld [vmem:[%s3 + $0x88] sm:$0xff]
    %v429 = vld [vmem:[%s3 + $0x90] sm:$0xff]
    %v430 = vld [vmem:[%s3 + $0x98] sm:$0xff]
    %v431 = vld [vmem:[%s3 + $0xa0] sm:$0xff]
    %v432 = vld [vmem:[%s3 + $0xa8] sm:$0xff]
    %v433 = vld [vmem:[%s3 + $0xb0] sm:$0xff]
    %v434 = vld [vmem:[%s3 + $0xb8] sm:$0xff]
    %v435 = vld [vmem:[%s3 + $0xc0] sm:$0xff]
    %v436 = vld [vmem:[%s3 + $0xc8] sm:$0xff]
    %v437 = vld [vmem:[%s3 + $0xd0] sm:$0xff]
    %v438 = vld [vmem:[%s3 + $0xd8] sm:$0xff]
    %v439 = vld [vmem:[%s3 + $0xe0] sm:$0xff]
    %v440 = vld [vmem:[%s3 + $0xe8] sm:$0xff]
    %v441 = vld [vmem:[%s3 + $0xf0] sm:$0xff]
    %v442 = vld [vmem:[%s3 + $0xf8] sm:$0xff]
    %v443 = vld [vmem:[%s3 + $0x100] sm:$0xff]
    %v444 = vld [vmem:[%s3 + $0x108] sm:$0xff]
    %v445 = vld [vmem:[%s3 + $0x110] sm:$0xff]
    %v446 = vld [vmem:[%s3 + $0x118] sm:$0xff]
    %v447 = vld [vmem:[%s3 + $0x120] sm:$0xff]
    %v448 = vld [vmem:[%s3 + $0x128] sm:$0xff]
    %v449 = vld [vmem:[%s3 + $0x130] sm:$0xff]
    %v450 = vld [vmem:[%s3 + $0x138] sm:$0xff]
    %v451 = vld [vmem:[%s3 + $0x140] sm:$0xff]
    %v452 = vld [vmem:[%s3 + $0x148] sm:$0xff]
    %v453 = vld [vmem:[%s3 + $0x150] sm:$0xff]
    %v454 = vld [vmem:[%s3 + $0x158] sm:$0xff]
    %v455 = vld [vmem:[%s3 + $0x160] sm:$0xff]
    %v456 = vld [vmem:[%s3 + $0x168] sm:$0xff]
    %v457 = vld [vmem:[%s3 + $0x170] sm:$0xff]
    %v458 = vld [vmem:[%s3 + $0x178] sm:$0xff]
    %v459 = vld [vmem:[%s3 + $0x180] sm:$0xff]
    %v460 = vld [vmem:[%s3 + $0x188] sm:$0xff]
    %v461 = vld [vmem:[%s3 + $0x190] sm:$0xff]
    %v462 = vld [vmem:[%s3 + $0x198] sm:$0xff]
    %v463 = vld [vmem:[%s3 + $0x1a0] sm:$0xff]
    %v464 = vld [vmem:[%s3 + $0x1a8] sm:$0xff]
    %v465 = vld [vmem:[%s3 + $0x1b0] sm:$0xff]
    %v466 = vld [vmem:[%s3 + $0x1b8] sm:$0xff]
    %v467 = vld [vmem:[%s3 + $0x1c0] sm:$0xff]
    %v468 = vld [vmem:[%s3 + $0x1c8] sm:$0xff]
    %v469 = vld [vmem:[%s3 + $0x1d0] sm:$0xff]
    %v470 = vld [vmem:[%s3 + $0x1d8] sm:$0xff]
    %v471 = vld [vmem:[%s3 + $0x1e0] sm:$0xff]
    %v472 = vld [vmem:[%s3 + $0x1e8] sm:$0xff]
    %v473 = vld [vmem:[%s3 + $0x1f0] sm:$0xff]
    %v474 = vld [vmem:[%s3 + $0x1f8] sm:$0xff]
    %v475 = vld [vmem:[#allocation2] sm:$0x3]
    %v476 = vld [vmem:[#allocation2 + $0x8] sm:$0x3]
    %v477 = vld [vmem:[#allocation2 + $0x10] sm:$0x3]
    %v478 = vld [vmem:[#allocation2 + $0x18] sm:$0x3]
    %479 = vmatprep.subr.mxu0 %v412
    %480 = vmatpush1.msra.mxu0 %v411
    %481 = vmatprep.subr.mxu0 %v416
    %482 = vmatpush1.msra.mxu0 %v415
    %483 = vmatprep.subr.mxu0 %v420
    %484 = vmatpush1.msra.mxu0 %v419
    %485 = vmatprep.subr.mxu0 %v424
    %486 = vmatpush1.msra.mxu0 %v423
    %487 = vmatprep.subr.mxu0 %v428
    %488 = vmatpush1.msra.mxu0 %v427
    %489 = vmatprep.subr.mxu0 %v432
    %490 = vmatpush1.msra.mxu0 %v431
    %491 = vmatprep.subr.mxu0 %v436
    %492 = vmatpush1.msra.mxu0 %v435
    %493 = vmatprep.subr.mxu0 %v440
    %494 = vmatpush1.msra.mxu0 %v439
    %495 = vmatprep.subr.mxu0 %v444
    %496 = vmatpush1.msra.mxu0 %v443
    %497 = vmatprep.subr.mxu0 %v448
    %498 = vmatpush1.msra.mxu0 %v447
    %499 = vmatprep.subr.mxu0 %v452
    %500 = vmatpush1.msra.mxu0 %v451
    %501 = vmatprep.subr.mxu0 %v456
    %502 = vmatpush1.msra.mxu0 %v455
    %503 = vmatprep.subr.mxu0 %v460
    %504 = vmatpush1.msra.mxu0 %v459
    %505 = vmatprep.subr.mxu0 %v464
    %506 = vmatpush1.msra.mxu0 %v463
    %507 = vmatprep.subr.mxu0 %v468
    %508 = vmatpush1.msra.mxu0 %v467
    %509 = vmatprep.subr.mxu0 %v472
    %510 = vmatpush1.msra.mxu0 %v471
    %511 = vmatprep.subr.mxu0 0.0
    %512 = vmatpush1.msra.mxu0 0.0
    %513 = vmatprep.subr.mxu0 0.0
    %514 = vmatpush1.msra.mxu0 0.0
    %515 = vmatprep.subr.mxu0 0.0
    %516 = vmatpush1.msra.mxu0 0.0
    %517 = vmatprep.subr.mxu0 0.0
    %518 = vmatpush1.msra.mxu0 0.0
    %519 = vmatprep.subr.mxu0 0.0
    %520 = vmatpush1.msra.mxu0 0.0
    %521 = vmatprep.subr.mxu0 0.0
    %522 = vmatpush1.msra.mxu0 0.0
    %523 = vmatprep.subr.mxu0 0.0
    %524 = vmatpush1.msra.mxu0 0.0
    %525 = vmatprep.subr.mxu0 0.0
    %526 = vmatpush1.msra.mxu0 0.0
    %527 = vmatprep.subr.mxu0 0.0
    %528 = vmatpush1.msra.mxu0 0.0
    %529 = vmatprep.subr.mxu0 0.0
    %530 = vmatpush1.msra.mxu0 0.0
    %531 = vmatprep.subr.mxu0 0.0
    %532 = vmatpush1.msra.mxu0 0.0
    %533 = vmatprep.subr.mxu0 0.0
    %534 = vmatpush1.msra.mxu0 0.0
    %535 = vmatprep.subr.mxu0 0.0
    %536 = vmatpush1.msra.mxu0 0.0
    %537 = vmatprep.subr.mxu0 0.0
    %538 = vmatpush1.msra.mxu0 0.0
    %539 = vmatprep.subr.mxu0 0.0
    %540 = vmatpush1.msra.mxu0 0.0
    %541 = vmatprep.subr.mxu0 0.0
    %542 = vmatpush1.msra.mxu0 0.0
    %543 = vmatprep.mubr.f32.mxu0 0.0
    %544 = vmatmul.mubr.f32.gmra.mrb[0].mxu0 0.0
    %v545 = vpop.f32.mrb[0].mxu0
    %v546 = vadd.f32 %v475, %v545
    %v547 = vpop.f32.mrb[0].mxu0
    %v548 = vadd.f32 %v476, %v547
    %549 = vdwg.mxu0
    %550 = vmatprep.subr.mxu0 %v414
    %551 = vmatpush1.msra.mxu0 %v413
    %552 = vmatprep.subr.mxu0 %v418
    %553 = vmatpush1.msra.mxu0 %v417
    %554 = vmatprep.subr.mxu0 %v422
    %555 = vmatpush1.msra.mxu0 %v421
    %556 = vmatprep.subr.mxu0 %v426
    %557 = vmatpush1.msra.mxu0 %v425
    %558 = vmatprep.subr.mxu0 %v430
    %559 = vmatpush1.msra.mxu0 %v429
    %560 = vmatprep.subr.mxu0 %v434
    %561 = vmatpush1.msra.mxu0 %v433
    %562 = vmatprep.subr.mxu0 %v438
    %563 = vmatpush1.msra.mxu0 %v437
    %564 = vmatprep.subr.mxu0 %v442
    %565 = vmatpush1.msra.mxu0 %v441
    %566 = vmatprep.subr.mxu0 %v446
    %567 = vmatpush1.msra.mxu0 %v445
    %568 = vmatprep.subr.mxu0 %v450
    %569 = vmatpush1.msra.mxu0 %v449
    %570 = vmatprep.subr.mxu0 %v454
    %571 = vmatpush1.msra.mxu0 %v453
    %572 = vmatprep.subr.mxu0 %v458
    %573 = vmatpush1.msra.mxu0 %v457
    %574 = vmatprep.subr.mxu0 %v462
    %575 = vmatpush1.msra.mxu0 %v461
    %576 = vmatprep.subr.mxu0 %v466
    %577 = vmatpush1.msra.mxu0 %v465
    %578 = vmatprep.subr.mxu0 %v470
    %579 = vmatpush1.msra.mxu0 %v469
    %580 = vmatprep.subr.mxu0 %v474
    %581 = vmatpush1.msra.mxu0 %v473
    %582 = vmatprep.subr.mxu0 0.0
    %583 = vmatpush1.msra.mxu0 0.0
    %584 = vmatprep.subr.mxu0 0.0
    %585 = vmatpush1.msra.mxu0 0.0
    %586 = vmatprep.subr.mxu0 0.0
    %587 = vmatpush1.msra.mxu0 0.0
    %588 = vmatprep.subr.mxu0 0.0
    %589 = vmatpush1.msra.mxu0 0.0
    %590 = vmatprep.subr.mxu0 0.0
    %591 = vmatpush1.msra.mxu0 0.0
    %592 = vmatprep.subr.mxu0 0.0
    %593 = vmatpush1.msra.mxu0 0.0
    %594 = vmatprep.subr.mxu0 0.0
    %595 = vmatpush1.msra.mxu0 0.0
    %596 = vmatprep.subr.mxu0 0.0
    %597 = vmatpush1.msra.mxu0 0.0
    %598 = vmatprep.subr.mxu0 0.0
    %599 = vmatpush1.msra.mxu0 0.0
    %600 = vmatprep.subr.mxu0 0.0
    %601 = vmatpush1.msra.mxu0 0.0
    %602 = vmatprep.subr.mxu0 0.0
    %603 = vmatpush1.msra.mxu0 0.0
    %604 = vmatprep.subr.mxu0 0.0
    %605 = vmatpush1.msra.mxu0 0.0
    %606 = vmatprep.subr.mxu0 0.0
    %607 = vmatpush1.msra.mxu0 0.0
    %608 = vmatprep.subr.mxu0 0.0
    %609 = vmatpush1.msra.mxu0 0.0
    %610 = vmatprep.subr.mxu0 0.0
    %611 = vmatpush1.msra.mxu0 0.0
    %612 = vmatprep.subr.mxu0 0.0
    %613 = vmatpush1.msra.mxu0 0.0
    %614 = vmatprep.mubr.f32.mxu0 0.0
    %615 = vmatmul.mubr.f32.gmra.mrb[0].mxu0 0.0
    %v616 = vpop.f32.mrb[0].mxu0
    %v617 = vadd.f32 %v477, %v616
    %v618 = vpop.f32.mrb[0].mxu0
    %v619 = vadd.f32 %v478, %v618
    %620 = vdwg.mxu0
    %v621 = vxor.u32 %v546, 2147483648
    %v622 = vmul.f32 %v621, 1.442695
    %v623 = vpow.pop %v622
    %v624 = vadd.f32 %v623, 1.0
    %v625 = vrcp.pop %v624
    %v626 = vmul.f32 1.0, %v625
    %v627 = vxor.u32 %v548, 2147483648
    %v628 = vmul.f32 %v627, 1.442695
    %v629 = vpow.pop %v628
    %v630 = vadd.f32 %v629, 1.0
    %v631 = vrcp.pop %v630
    %v632 = vmul.f32 1.0, %v631
    %v633 = vtanh.pop %v617
    %v634 = vxor.u32 %v619, 2147483648
    %v635 = vmul.f32 %v634, 1.442695
    %v636 = vpow.pop %v635
    %v637 = vadd.f32 %v636, 1.0
    %v638 = vrcp.pop %v637
    %v639 = vmul.f32 1.0, %v638
    %v640 = vmul.f32 %v632, 0.0
    %v641 = vmul.f32 %v626, %v633
    %v642 = vadd.f32 %v640, %v641
    %v643 = vtanh.pop %v642
    %v644 = vmul.f32 %v639, %v643
    %645 = vst [vmem:[#allocation3] sm:$0x3] %v644
    %v646 = vld [vmem:[#allocation2] sm:$0xc]
    %v647 = vld [vmem:[#allocation2 + $0x8] sm:$0xc]
    %v648 = vld [vmem:[#allocation2 + $0x10] sm:$0xc]
    %v649 = vld [vmem:[#allocation2 + $0x18] sm:$0xc]
    %v654 = vrot.slane %v646, 2
    %v655 = vrot.slane %v647, 2
    %v656 = vrot.slane %v648, 2
    %v657 = vrot.slane %v649, 2
    %662 = vmatprep.subr.mxu0 %v412
    %663 = vmatpush1.msra.mxu0 %v411
    %664 = vmatprep.subr.mxu0 %v416
    %665 = vmatpush1.msra.mxu0 %v415
    %666 = vmatprep.subr.mxu0 %v420
    %667 = vmatpush1.msra.mxu0 %v419
    %668 = vmatprep.subr.mxu0 %v424
    %669 = vmatpush1.msra.mxu0 %v423
    %670 = vmatprep.subr.mxu0 %v428
    %671 = vmatpush1.msra.mxu0 %v427
    %672 = vmatprep.subr.mxu0 %v432
    %673 = vmatpush1.msra.mxu0 %v431
    %674 = vmatprep.subr.mxu0 %v436
    %675 = vmatpush1.msra.mxu0 %v435
    %676 = vmatprep.subr.mxu0 %v440
    %677 = vmatpush1.msra.mxu0 %v439
    %678 = vmatprep.subr.mxu0 %v444
    %679 = vmatpush1.msra.mxu0 %v443
    %680 = vmatprep.subr.mxu0 %v448
    %681 = vmatpush1.msra.mxu0 %v447
    %682 = vmatprep.subr.mxu0 %v452
    %683 = vmatpush1.msra.mxu0 %v451
    %684 = vmatprep.subr.mxu0 %v456
    %685 = vmatpush1.msra.mxu0 %v455
    %686 = vmatprep.subr.mxu0 %v460
    %687 = vmatpush1.msra.mxu0 %v459
    %688 = vmatprep.subr.mxu0 %v464
    %689 = vmatpush1.msra.mxu0 %v463
    %690 = vmatprep.subr.mxu0 %v468
    %691 = vmatpush1.msra.mxu0 %v467
    %692 = vmatprep.subr.mxu0 %v472
    %693 = vmatpush1.msra.mxu0 %v471
    %694 = vmatprep.subr.mxu0 0.0
    %695 = vmatpush1.msra.mxu0 0.0
    %696 = vmatprep.subr.mxu0 0.0
    %697 = vmatpush1.msra.mxu0 0.0
    %698 = vmatprep.subr.mxu0 0.0
    %699 = vmatpush1.msra.mxu0 0.0
    %700 = vmatprep.subr.mxu0 0.0
    %701 = vmatpush1.msra.mxu0 0.0
    %702 = vmatprep.subr.mxu0 0.0
    %703 = vmatpush1.msra.mxu0 0.0
    %704 = vmatprep.subr.mxu0 0.0
    %705 = vmatpush1.msra.mxu0 0.0
    %706 = vmatprep.subr.mxu0 0.0
    %707 = vmatpush1.msra.mxu0 0.0
    %708 = vmatprep.subr.mxu0 0.0
    %709 = vmatpush1.msra.mxu0 0.0
    %710 = vmatprep.subr.mxu0 0.0
    %711 = vmatpush1.msra.mxu0 0.0
    %712 = vmatprep.subr.mxu0 0.0
    %713 = vmatpush1.msra.mxu0 0.0
    %714 = vmatprep.subr.mxu0 0.0
    %715 = vmatpush1.msra.mxu0 0.0
    %716 = vmatprep.subr.mxu0 0.0
    %717 = vmatpush1.msra.mxu0 0.0
    %718 = vmatprep.subr.mxu0 0.0
    %719 = vmatpush1.msra.mxu0 0.0
    %720 = vmatprep.subr.mxu0 0.0
    %721 = vmatpush1.msra.mxu0 0.0
    %722 = vmatprep.subr.mxu0 0.0
    %723 = vmatpush1.msra.mxu0 0.0
    %724 = vmatprep.subr.mxu0 0.0
    %725 = vmatpush1.msra.mxu0 0.0
    %726 = vmatprep.mubr.f32.mxu0 0.0
    %727 = vmatmul.mubr.f32.gmra.mrb[0].mxu0 %v644
    %v728 = vpop.f32.mrb[0].mxu0
    %v729 = vadd.f32 %v654, %v728
    %v730 = vpop.f32.mrb[0].mxu0
    %v731 = vadd.f32 %v655, %v730
    %732 = vdwg.mxu0
    %733 = vmatprep.subr.mxu0 %v414
    %734 = vmatpush1.msra.mxu0 %v413
    %735 = vmatprep.subr.mxu0 %v418
    %736 = vmatpush1.msra.mxu0 %v417
    %737 = vmatprep.subr.mxu0 %v422
    %738 = vmatpush1.msra.mxu0 %v421
    %739 = vmatprep.subr.mxu0 %v426
    %740 = vmatpush1.msra.mxu0 %v425
    %741 = vmatprep.subr.mxu0 %v430
    %742 = vmatpush1.msra.mxu0 %v429
    %743 = vmatprep.subr.mxu0 %v434
    %744 = vmatpush1.msra.mxu0 %v433
    %745 = vmatprep.subr.mxu0 %v438
    %746 = vmatpush1.msra.mxu0 %v437
    %747 = vmatprep.subr.mxu0 %v442
    %748 = vmatpush1.msra.mxu0 %v441
    %749 = vmatprep.subr.mxu0 %v446
    %750 = vmatpush1.msra.mxu0 %v445
    %751 = vmatprep.subr.mxu0 %v450
    %752 = vmatpush1.msra.mxu0 %v449
    %753 = vmatprep.subr.mxu0 %v454
    %754 = vmatpush1.msra.mxu0 %v453
    %755 = vmatprep.subr.mxu0 %v458
    %756 = vmatpush1.msra.mxu0 %v457
    %757 = vmatprep.subr.mxu0 %v462
    %758 = vmatpush1.msra.mxu0 %v461
    %759 = vmatprep.subr.mxu0 %v466
    %760 = vmatpush1.msra.mxu0 %v465
    %761 = vmatprep.subr.mxu0 %v470
    %762 = vmatpush1.msra.mxu0 %v469
    %763 = vmatprep.subr.mxu0 %v474
    %764 = vmatpush1.msra.mxu0 %v473
    %765 = vmatprep.subr.mxu0 0.0
    %766 = vmatpush1.msra.mxu0 0.0
    %767 = vmatprep.subr.mxu0 0.0
    %768 = vmatpush1.msra.mxu0 0.0
    %769 = vmatprep.subr.mxu0 0.0
    %770 = vmatpush1.msra.mxu0 0.0
    %771 = vmatprep.subr.mxu0 0.0
    %772 = vmatpush1.msra.mxu0 0.0
    %773 = vmatprep.subr.mxu0 0.0
    %774 = vmatpush1.msra.mxu0 0.0
    %775 = vmatprep.subr.mxu0 0.0
    %776 = vmatpush1.msra.mxu0 0.0
    %777 = vmatprep.subr.mxu0 0.0
    %778 = vmatpush1.msra.mxu0 0.0
    %779 = vmatprep.subr.mxu0 0.0
    %780 = vmatpush1.msra.mxu0 0.0
    %781 = vmatprep.subr.mxu0 0.0
    %782 = vmatpush1.msra.mxu0 0.0
    %783 = vmatprep.subr.mxu0 0.0
    %784 = vmatpush1.msra.mxu0 0.0
    %785 = vmatprep.subr.mxu0 0.0
    %786 = vmatpush1.msra.mxu0 0.0
    %787 = vmatprep.subr.mxu0 0.0
    %788 = vmatpush1.msra.mxu0 0.0
    %789 = vmatprep.subr.mxu0 0.0
    %790 = vmatpush1.msra.mxu0 0.0
    %791 = vmatprep.subr.mxu0 0.0
    %792 = vmatpush1.msra.mxu0 0.0
    %793 = vmatprep.subr.mxu0 0.0
    %794 = vmatpush1.msra.mxu0 0.0
    %795 = vmatprep.subr.mxu0 0.0
    %796 = vmatpush1.msra.mxu0 0.0
    %797 = vmatprep.mubr.f32.mxu0 0.0
    %798 = vmatmul.mubr.f32.gmra.mrb[0].mxu0 %v644
    %v799 = vpop.f32.mrb[0].mxu0
    %v800 = vadd.f32 %v656, %v799
    %v801 = vpop.f32.mrb[0].mxu0
    %v802 = vadd.f32 %v657, %v801
    %803 = vdwg.mxu0
    %v804 = vxor.u32 %v729, 2147483648
    %v805 = vmul.f32 %v804, 1.442695
    %v806 = vpow.pop %v805
    %v807 = vadd.f32 %v806, 1.0
    %v808 = vrcp.pop %v807
    %v809 = vmul.f32 1.0, %v808
    %v810 = vxor.u32 %v731, 2147483648
    %v811 = vmul.f32 %v810, 1.442695
    %v812 = vpow.pop %v811
    %v813 = vadd.f32 %v812, 1.0
    %v814 = vrcp.pop %v813
    %v815 = vmul.f32 1.0, %v814
    %v816 = vtanh.pop %v800
    %v817 = vxor.u32 %v802, 2147483648
    %v818 = vmul.f32 %v817, 1.442695
    %v819 = vpow.pop %v818
    %v820 = vadd.f32 %v819, 1.0
    %v821 = vrcp.pop %v820
    %v822 = vmul.f32 1.0, %v821
    %v823 = vmul.f32 %v815, %v642
    %v824 = vmul.f32 %v809, %v816
    %v825 = vadd.f32 %v823, %v824
    %v826 = vtanh.pop %v825
    %v827 = vmul.f32 %v822, %v826
    %s828 = scalar_lea.vmem [#allocation3], 2
    %829 = vst [vmem:[%s828] sm:$0x3] %v827
    %v830 = vld [vmem:[#allocation2] sm:$0x30]
    %v831 = vld [vmem:[#allocation2 + $0x8] sm:$0x30]
    %v832 = vld [vmem:[#allocation2 + $0x10] sm:$0x30]
    %v833 = vld [vmem:[#allocation2 + $0x18] sm:$0x30]
    %v838 = vrot.slane %v830, 4
    %v839 = vrot.slane %v831, 4
    %v840 = vrot.slane %v832, 4
    %v841 = vrot.slane %v833, 4
    %846 = vmatprep.subr.mxu0 %v412
    %847 = vmatpush1.msra.mxu0 %v411
    %848 = vmatprep.subr.mxu0 %v416
    %849 = vmatpush1.msra.mxu0 %v415
    %850 = vmatprep.subr.mxu0 %v420
    %851 = vmatpush1.msra.mxu0 %v419
    %852 = vmatprep.subr.mxu0 %v424
    %853 = vmatpush1.msra.mxu0 %v423
    %854 = vmatprep.subr.mxu0 %v428
    %855 = vmatpush1.msra.mxu0 %v427
    %856 = vmatprep.subr.mxu0 %v432
    %857 = vmatpush1.msra.mxu0 %v431
    %858 = vmatprep.subr.mxu0 %v436
    %859 = vmatpush1.msra.mxu0 %v435
    %860 = vmatprep.subr.mxu0 %v440
    %861 = vmatpush1.msra.mxu0 %v439
    %862 = vmatprep.subr.mxu0 %v444
    %863 = vmatpush1.msra.mxu0 %v443
    %864 = vmatprep.subr.mxu0 %v448
    %865 = vmatpush1.msra.mxu0 %v447
    %866 = vmatprep.subr.mxu0 %v452
    %867 = vmatpush1.msra.mxu0 %v451
    %868 = vmatprep.subr.mxu0 %v456
    %869 = vmatpush1.msra.mxu0 %v455
    %870 = vmatprep.subr.mxu0 %v460
    %871 = vmatpush1.msra.mxu0 %v459
    %872 = vmatprep.subr.mxu0 %v464
    %873 = vmatpush1.msra.mxu0 %v463
    %874 = vmatprep.subr.mxu0 %v468
    %875 = vmatpush1.msra.mxu0 %v467
    %876 = vmatprep.subr.mxu0 %v472
    %877 = vmatpush1.msra.mxu0 %v471
    %878 = vmatprep.subr.mxu0 0.0
    %879 = vmatpush1.msra.mxu0 0.0
    %880 = vmatprep.subr.mxu0 0.0
    %881 = vmatpush1.msra.mxu0 0.0
    %882 = vmatprep.subr.mxu0 0.0
    %883 = vmatpush1.msra.mxu0 0.0
    %884 = vmatprep.subr.mxu0 0.0
    %885 = vmatpush1.msra.mxu0 0.0
    %886 = vmatprep.subr.mxu0 0.0
    %887 = vmatpush1.msra.mxu0 0.0
    %888 = vmatprep.subr.mxu0 0.0
    %889 = vmatpush1.msra.mxu0 0.0
    %890 = vmatprep.subr.mxu0 0.0
    %891 = vmatpush1.msra.mxu0 0.0
    %892 = vmatprep.subr.mxu0 0.0
    %893 = vmatpush1.msra.mxu0 0.0
    %894 = vmatprep.subr.mxu0 0.0
    %895 = vmatpush1.msra.mxu0 0.0
    %896 = vmatprep.subr.mxu0 0.0
    %897 = vmatpush1.msra.mxu0 0.0
    %898 = vmatprep.subr.mxu0 0.0
    %899 = vmatpush1.msra.mxu0 0.0
    %900 = vmatprep.subr.mxu0 0.0
    %901 = vmatpush1.msra.mxu0 0.0
    %902 = vmatprep.subr.mxu0 0.0
    %903 = vmatpush1.msra.mxu0 0.0
    %904 = vmatprep.subr.mxu0 0.0
    %905 = vmatpush1.msra.mxu0 0.0
    %906 = vmatprep.subr.mxu0 0.0
    %907 = vmatpush1.msra.mxu0 0.0
    %908 = vmatprep.subr.mxu0 0.0
    %909 = vmatpush1.msra.mxu0 0.0
    %910 = vmatprep.mubr.f32.mxu0 0.0
    %911 = vmatmul.mubr.f32.gmra.mrb[0].mxu0 %v827
    %v912 = vpop.f32.mrb[0].mxu0
    %v913 = vadd.f32 %v838, %v912
    %v914 = vpop.f32.mrb[0].mxu0
    %v915 = vadd.f32 %v839, %v914
    %916 = vdwg.mxu0
    %917 = vmatprep.subr.mxu0 %v414
    %918 = vmatpush1.msra.mxu0 %v413
    %919 = vmatprep.subr.mxu0 %v418
    %920 = vmatpush1.msra.mxu0 %v417
    %921 = vmatprep.subr.mxu0 %v422
    %922 = vmatpush1.msra.mxu0 %v421
    %923 = vmatprep.subr.mxu0 %v426
    %924 = vmatpush1.msra.mxu0 %v425
    %925 = vmatprep.subr.mxu0 %v430
    %926 = vmatpush1.msra.mxu0 %v429
    %927 = vmatprep.subr.mxu0 %v434
    %928 = vmatpush1.msra.mxu0 %v433
    %929 = vmatprep.subr.mxu0 %v438
    %930 = vmatpush1.msra.mxu0 %v437
    %931 = vmatprep.subr.mxu0 %v442
    %932 = vmatpush1.msra.mxu0 %v441
    %933 = vmatprep.subr.mxu0 %v446
    %934 = vmatpush1.msra.mxu0 %v445
    %935 = vmatprep.subr.mxu0 %v450
    %936 = vmatpush1.msra.mxu0 %v449
    %937 = vmatprep.subr.mxu0 %v454
    %938 = vmatpush1.msra.mxu0 %v453
    %939 = vmatprep.subr.mxu0 %v458
    %940 = vmatpush1.msra.mxu0 %v457
    %941 = vmatprep.subr.mxu0 %v462
    %942 = vmatpush1.msra.mxu0 %v461
    %943 = vmatprep.subr.mxu0 %v466
    %944 = vmatpush1.msra.mxu0 %v465
    %945 = vmatprep.subr.mxu0 %v470
    %946 = vmatpush1.msra.mxu0 %v469
    %947 = vmatprep.subr.mxu0 %v474
    %948 = vmatpush1.msra.mxu0 %v473
    %949 = vmatprep.subr.mxu0 0.0
    %950 = vmatpush1.msra.mxu0 0.0
    %951 = vmatprep.subr.mxu0 0.0
    %952 = vmatpush1.msra.mxu0 0.0
    %953 = vmatprep.subr.mxu0 0.0
    %954 = vmatpush1.msra.mxu0 0.0
    %955 = vmatprep.subr.mxu0 0.0
    %956 = vmatpush1.msra.mxu0 0.0
    %957 = vmatprep.subr.mxu0 0.0
    %958 = vmatpush1.msra.mxu0 0.0
    %959 = vmatprep.subr.mxu0 0.0
    %960 = vmatpush1.msra.mxu0 0.0
    %961 = vmatprep.subr.mxu0 0.0
    %962 = vmatpush1.msra.mxu0 0.0
    %963 = vmatprep.subr.mxu0 0.0
    %964 = vmatpush1.msra.mxu0 0.0
    %965 = vmatprep.subr.mxu0 0.0
    %966 = vmatpush1.msra.mxu0 0.0
    %967 = vmatprep.subr.mxu0 0.0
    %968 = vmatpush1.msra.mxu0 0.0
    %969 = vmatprep.subr.mxu0 0.0
    %970 = vmatpush1.msra.mxu0 0.0
    %971 = vmatprep.subr.mxu0 0.0
    %972 = vmatpush1.msra.mxu0 0.0
    %973 = vmatprep.subr.mxu0 0.0
    %974 = vmatpush1.msra.mxu0 0.0
    %975 = vmatprep.subr.mxu0 0.0
    %976 = vmatpush1.msra.mxu0 0.0
    %977 = vmatprep.subr.mxu0 0.0
    %978 = vmatpush1.msra.mxu0 0.0
    %979 = vmatprep.subr.mxu0 0.0
    %980 = vmatpush1.msra.mxu0 0.0
    %981 = vmatprep.mubr.f32.mxu0 0.0
    %982 = vmatmul.mubr.f32.gmra.mrb[0].mxu0 %v827
    %v983 = vpop.f32.mrb[0].mxu0
    %v984 = vadd.f32 %v840, %v983
    %v985 = vpop.f32.mrb[0].mxu0
    %v986 = vadd.f32 %v841, %v985
    %987 = vdwg.mxu0
    %v988 = vxor.u32 %v913, 2147483648
    %v989 = vmul.f32 %v988, 1.442695
    %v990 = vpow.pop %v989
    %v991 = vadd.f32 %v990, 1.0
    %v992 = vrcp.pop %v991
    %v993 = vmul.f32 1.0, %v992
    %v994 = vxor.u32 %v915, 2147483648
    %v995 = vmul.f32 %v994, 1.442695
    %v996 = vpow.pop %v995
    %v997 = vadd.f32 %v996, 1.0
    %v998 = vrcp.pop %v997
    %v999 = vmul.f32 1.0, %v998
    %v1000 = vtanh.pop %v984
    %v1001 = vxor.u32 %v986, 2147483648
    %v1002 = vmul.f32 %v1001, 1.442695
    %v1003 = vpow.pop %v1002
    %v1004 = vadd.f32 %v1003, 1.0
    %v1005 = vrcp.pop %v1004
    %v1006 = vmul.f32 1.0, %v1005
    %v1007 = vmul.f32 %v999, %v825
    %v1008 = vmul.f32 %v993, %v1000
    %v1009 = vadd.f32 %v1007, %v1008
    %v1010 = vtanh.pop %v1009
    %v1011 = vmul.f32 %v1006, %v1010
    %s1012 = scalar_lea.vmem [#allocation3], 4
    %1013 = vst [vmem:[%s1012] sm:$0x3] %v1011
    %v1014 = vld [vmem:[#allocation2] sm:$0xc0]
    %v1015 = vld [vmem:[#allocation2 + $0x8] sm:$0xc0]
    %v1016 = vld [vmem:[#allocation2 + $0x10] sm:$0xc0]
    %v1017 = vld [vmem:[#allocation2 + $0x18] sm:$0xc0]
    %v1022 = vrot.slane %v1014, 6
    %v1023 = vrot.slane %v1015, 6
    %v1024 = vrot.slane %v1016, 6
    %v1025 = vrot.slane %v1017, 6
    %1030 = vmatprep.subr.mxu0 %v412
    %1031 = vmatpush1.msra.mxu0 %v411
    %1032 = vmatprep.subr.mxu0 %v416
    %1033 = vmatpush1.msra.mxu0 %v415
    %1034 = vmatprep.subr.mxu0 %v420
    %1035 = vmatpush1.msra.mxu0 %v419
    %1036 = vmatprep.subr.mxu0 %v424
    %1037 = vmatpush1.msra.mxu0 %v423
    %1038 = vmatprep.subr.mxu0 %v428
    %1039 = vmatpush1.msra.mxu0 %v427
    %1040 = vmatprep.subr.mxu0 %v432
    %1041 = vmatpush1.msra.mxu0 %v431
    %1042 = vmatprep.subr.mxu0 %v436
    %1043 = vmatpush1.msra.mxu0 %v435
    %1044 = vmatprep.subr.mxu0 %v440
    %1045 = vmatpush1.msra.mxu0 %v439
    %1046 = vmatprep.subr.mxu0 %v444
    %1047 = vmatpush1.msra.mxu0 %v443
    %1048 = vmatprep.subr.mxu0 %v448
    %1049 = vmatpush1.msra.mxu0 %v447
    %1050 = vmatprep.subr.mxu0 %v452
    %1051 = vmatpush1.msra.mxu0 %v451
    %1052 = vmatprep.subr.mxu0 %v456
    %1053 = vmatpush1.msra.mxu0 %v455
    %1054 = vmatprep.subr.mxu0 %v460
    %1055 = vmatpush1.msra.mxu0 %v459
    %1056 = vmatprep.subr.mxu0 %v464
    %1057 = vmatpush1.msra.mxu0 %v463
    %1058 = vmatprep.subr.mxu0 %v468
    %1059 = vmatpush1.msra.mxu0 %v467
    %1060 = vmatprep.subr.mxu0 %v472
    %1061 = vmatpush1.msra.mxu0 %v471
    %1062 = vmatprep.subr.mxu0 0.0
    %1063 = vmatpush1.msra.mxu0 0.0
    %1064 = vmatprep.subr.mxu0 0.0
    %1065 = vmatpush1.msra.mxu0 0.0
    %1066 = vmatprep.subr.mxu0 0.0
    %1067 = vmatpush1.msra.mxu0 0.0
    %1068 = vmatprep.subr.mxu0 0.0
    %1069 = vmatpush1.msra.mxu0 0.0
    %1070 = vmatprep.subr.mxu0 0.0
    %1071 = vmatpush1.msra.mxu0 0.0
    %1072 = vmatprep.subr.mxu0 0.0
    %1073 = vmatpush1.msra.mxu0 0.0
    %1074 = vmatprep.subr.mxu0 0.0
    %1075 = vmatpush1.msra.mxu0 0.0
    %1076 = vmatprep.subr.mxu0 0.0
    %1077 = vmatpush1.msra.mxu0 0.0
    %1078 = vmatprep.subr.mxu0 0.0
    %1079 = vmatpush1.msra.mxu0 0.0
    %1080 = vmatprep.subr.mxu0 0.0
    %1081 = vmatpush1.msra.mxu0 0.0
    %1082 = vmatprep.subr.mxu0 0.0
    %1083 = vmatpush1.msra.mxu0 0.0
    %1084 = vmatprep.subr.mxu0 0.0
    %1085 = vmatpush1.msra.mxu0 0.0
    %1086 = vmatprep.subr.mxu0 0.0
    %1087 = vmatpush1.msra.mxu0 0.0
    %1088 = vmatprep.subr.mxu0 0.0
    %1089 = vmatpush1.msra.mxu0 0.0
    %1090 = vmatprep.subr.mxu0 0.0
    %1091 = vmatpush1.msra.mxu0 0.0
    %1092 = vmatprep.subr.mxu0 0.0
    %1093 = vmatpush1.msra.mxu0 0.0
    %1094 = vmatprep.mubr.f32.mxu0 0.0
    %1095 = vmatmul.mubr.f32.gmra.mrb[0].mxu0 %v1011
    %v1096 = vpop.f32.mrb[0].mxu0
    %v1097 = vadd.f32 %v1022, %v1096
    %v1098 = vpop.f32.mrb[0].mxu0
    %v1099 = vadd.f32 %v1023, %v1098
    %1100 = vdwg.mxu0
    %1101 = vmatprep.subr.mxu0 %v414
    %1102 = vmatpush1.msra.mxu0 %v413
    %1103 = vmatprep.subr.mxu0 %v418
    %1104 = vmatpush1.msra.mxu0 %v417
    %1105 = vmatprep.subr.mxu0 %v422
    %1106 = vmatpush1.msra.mxu0 %v421
    %1107 = vmatprep.subr.mxu0 %v426
    %1108 = vmatpush1.msra.mxu0 %v425
    %1109 = vmatprep.subr.mxu0 %v430
    %1110 = vmatpush1.msra.mxu0 %v429
    %1111 = vmatprep.subr.mxu0 %v434
    %1112 = vmatpush1.msra.mxu0 %v433
    %1113 = vmatprep.subr.mxu0 %v438
    %1114 = vmatpush1.msra.mxu0 %v437
    %1115 = vmatprep.subr.mxu0 %v442
    %1116 = vmatpush1.msra.mxu0 %v441
    %1117 = vmatprep.subr.mxu0 %v446
    %1118 = vmatpush1.msra.mxu0 %v445
    %1119 = vmatprep.subr.mxu0 %v450
    %1120 = vmatpush1.msra.mxu0 %v449
    %1121 = vmatprep.subr.mxu0 %v454
    %1122 = vmatpush1.msra.mxu0 %v453
    %1123 = vmatprep.subr.mxu0 %v458
    %1124 = vmatpush1.msra.mxu0 %v457
    %1125 = vmatprep.subr.mxu0 %v462
    %1126 = vmatpush1.msra.mxu0 %v461
    %1127 = vmatprep.subr.mxu0 %v466
    %1128 = vmatpush1.msra.mxu0 %v465
    %1129 = vmatprep.subr.mxu0 %v470
    %1130 = vmatpush1.msra.mxu0 %v469
    %1131 = vmatprep.subr.mxu0 %v474
    %1132 = vmatpush1.msra.mxu0 %v473
    %1133 = vmatprep.subr.mxu0 0.0
    %1134 = vmatpush1.msra.mxu0 0.0
    %1135 = vmatprep.subr.mxu0 0.0
    %1136 = vmatpush1.msra.mxu0 0.0
    %1137 = vmatprep.subr.mxu0 0.0
    %1138 = vmatpush1.msra.mxu0 0.0
    %1139 = vmatprep.subr.mxu0 0.0
    %1140 = vmatpush1.msra.mxu0 0.0
    %1141 = vmatprep.subr.mxu0 0.0
    %1142 = vmatpush1.msra.mxu0 0.0
    %1143 = vmatprep.subr.mxu0 0.0
    %1144 = vmatpush1.msra.mxu0 0.0
    %1145 = vmatprep.subr.mxu0 0.0
    %1146 = vmatpush1.msra.mxu0 0.0
    %1147 = vmatprep.subr.mxu0 0.0
    %1148 = vmatpush1.msra.mxu0 0.0
    %1149 = vmatprep.subr.mxu0 0.0
    %1150 = vmatpush1.msra.mxu0 0.0
    %1151 = vmatprep.subr.mxu0 0.0
    %1152 = vmatpush1.msra.mxu0 0.0
    %1153 = vmatprep.subr.mxu0 0.0
    %1154 = vmatpush1.msra.mxu0 0.0
    %1155 = vmatprep.subr.mxu0 0.0
    %1156 = vmatpush1.msra.mxu0 0.0
    %1157 = vmatprep.subr.mxu0 0.0
    %1158 = vmatpush1.msra.mxu0 0.0
    %1159 = vmatprep.subr.mxu0 0.0
    %1160 = vmatpush1.msra.mxu0 0.0
    %1161 = vmatprep.subr.mxu0 0.0
    %1162 = vmatpush1.msra.mxu0 0.0
    %1163 = vmatprep.subr.mxu0 0.0
    %1164 = vmatpush1.msra.mxu0 0.0
    %1165 = vmatprep.mubr.f32.mxu0 0.0
    %1166 = vmatmul.mubr.f32.gmra.mrb[0].mxu0 %v1011
    %v1167 = vpop.f32.mrb[0].mxu0
    %v1168 = vadd.f32 %v1024, %v1167
    %v1169 = vpop.f32.mrb[0].mxu0
    %v1170 = vadd.f32 %v1025, %v1169
    %1171 = vdwg.mxu0
    %v1172 = vxor.u32 %v1097, 2147483648
    %v1173 = vmul.f32 %v1172, 1.442695
    %v1174 = vpow.pop %v1173
    %v1175 = vadd.f32 %v1174, 1.0
    %v1176 = vrcp.pop %v1175
    %v1177 = vmul.f32 1.0, %v1176
    %v1178 = vxor.u32 %v1099, 2147483648
    %v1179 = vmul.f32 %v1178, 1.442695
    %v1180 = vpow.pop %v1179
    %v1181 = vadd.f32 %v1180, 1.0
    %v1182 = vrcp.pop %v1181
    %v1183 = vmul.f32 1.0, %v1182
    %v1184 = vtanh.pop %v1168
    %v1185 = vxor.u32 %v1170, 2147483648
    %v1186 = vmul.f32 %v1185, 1.442695
    %v1187 = vpow.pop %v1186
    %v1188 = vadd.f32 %v1187, 1.0
    %v1189 = vrcp.pop %v1188
    %v1190 = vmul.f32 1.0, %v1189
    %v1191 = vmul.f32 %v1183, %v1009
    %v1192 = vmul.f32 %v1177, %v1184
    %v1193 = vadd.f32 %v1191, %v1192
    %v1194 = vtanh.pop %v1193
    %v1195 = vmul.f32 %v1190, %v1194
    %s1196 = scalar_lea.vmem [#allocation3], 6
    %1197 = vst [vmem:[%s1196] sm:$0x3] %v1195
    %v1198 = vld [vmem:[#allocation2 + $0x20] sm:$0x3]
    %v1199 = vld [vmem:[#allocation2 + $0x28] sm:$0x3]
    %v1200 = vld [vmem:[#allocation2 + $0x30] sm:$0x3]
    %v1201 = vld [vmem:[#allocation2 + $0x38] sm:$0x3]
    %1202 = vmatprep.subr.mxu0 %v412
    %1203 = vmatpush1.msra.mxu0 %v411
    %1204 = vmatprep.subr.mxu0 %v416
    %1205 = vmatpush1.msra.mxu0 %v415
    %1206 = vmatprep.subr.mxu0 %v420
    %1207 = vmatpush1.msra.mxu0 %v419
    %1208 = vmatprep.subr.mxu0 %v424
    %1209 = vmatpush1.msra.mxu0 %v423
    %1210 = vmatprep.subr.mxu0 %v428
    %1211 = vmatpush1.msra.mxu0 %v427
    %1212 = vmatprep.subr.mxu0 %v432
    %1213 = vmatpush1.msra.mxu0 %v431
    %1214 = vmatprep.subr.mxu0 %v436
    %1215 = vmatpush1.msra.mxu0 %v435
    %1216 = vmatprep.subr.mxu0 %v440
    %1217 = vmatpush1.msra.mxu0 %v439
    %1218 = vmatprep.subr.mxu0 %v444
    %1219 = vmatpush1.msra.mxu0 %v443
    %1220 = vmatprep.subr.mxu0 %v448
    %1221 = vmatpush1.msra.mxu0 %v447
    %1222 = vmatprep.subr.mxu0 %v452
    %1223 = vmatpush1.msra.mxu0 %v451
    %1224 = vmatprep.subr.mxu0 %v456
    %1225 = vmatpush1.msra.mxu0 %v455
    %1226 = vmatprep.subr.mxu0 %v460
    %1227 = vmatpush1.msra.mxu0 %v459
    %1228 = vmatprep.subr.mxu0 %v464
    %1229 = vmatpush1.msra.mxu0 %v463
    %1230 = vmatprep.subr.mxu0 %v468
    %1231 = vmatpush1.msra.mxu0 %v467
    %1232 = vmatprep.subr.mxu0 %v472
    %1233 = vmatpush1.msra.mxu0 %v471
    %1234 = vmatprep.subr.mxu0 0.0
    %1235 = vmatpush1.msra.mxu0 0.0
    %1236 = vmatprep.subr.mxu0 0.0
    %1237 = vmatpush1.msra.mxu0 0.0
    %1238 = vmatprep.subr.mxu0 0.0
    %1239 = vmatpush1.msra.mxu0 0.0
    %1240 = vmatprep.subr.mxu0 0.0
    %1241 = vmatpush1.msra.mxu0 0.0
    %1242 = vmatprep.subr.mxu0 0.0
    %1243 = vmatpush1.msra.mxu0 0.0
    %1244 = vmatprep.subr.mxu0 0.0
    %1245 = vmatpush1.msra.mxu0 0.0
    %1246 = vmatprep.subr.mxu0 0.0
    %1247 = vmatpush1.msra.mxu0 0.0
    %1248 = vmatprep.subr.mxu0 0.0
    %1249 = vmatpush1.msra.mxu0 0.0
    %1250 = vmatprep.subr.mxu0 0.0
    %1251 = vmatpush1.msra.mxu0 0.0
    %1252 = vmatprep.subr.mxu0 0.0
    %1253 = vmatpush1.msra.mxu0 0.0
    %1254 = vmatprep.subr.mxu0 0.0
    %1255 = vmatpush1.msra.mxu0 0.0
    %1256 = vmatprep.subr.mxu0 0.0
    %1257 = vmatpush1.msra.mxu0 0.0
    %1258 = vmatprep.subr.mxu0 0.0
    %1259 = vmatpush1.msra.mxu0 0.0
    %1260 = vmatprep.subr.mxu0 0.0
    %1261 = vmatpush1.msra.mxu0 0.0
    %1262 = vmatprep.subr.mxu0 0.0
    %1263 = vmatpush1.msra.mxu0 0.0
    %1264 = vmatprep.subr.mxu0 0.0
    %1265 = vmatpush1.msra.mxu0 0.0
    %1266 = vmatprep.mubr.f32.mxu0 0.0
    %1267 = vmatmul.mubr.f32.gmra.mrb[0].mxu0 %v1195
    %v1268 = vpop.f32.mrb[0].mxu0
    %v1269 = vadd.f32 %v1198, %v1268
    %v1270 = vpop.f32.mrb[0].mxu0
    %v1271 = vadd.f32 %v1199, %v1270
    %1272 = vdwg.mxu0
    %1273 = vmatprep.subr.mxu0 %v414
    %1274 = vmatpush1.msra.mxu0 %v413
    %1275 = vmatprep.subr.mxu0 %v418
    %1276 = vmatpush1.msra.mxu0 %v417
    %1277 = vmatprep.subr.mxu0 %v422
    %1278 = vmatpush1.msra.mxu0 %v421
    %1279 = vmatprep.subr.mxu0 %v426
    %1280 = vmatpush1.msra.mxu0 %v425
    %1281 = vmatprep.subr.mxu0 %v430
    %1282 = vmatpush1.msra.mxu0 %v429
    %1283 = vmatprep.subr.mxu0 %v434
    %1284 = vmatpush1.msra.mxu0 %v433
    %1285 = vmatprep.subr.mxu0 %v438
    %1286 = vmatpush1.msra.mxu0 %v437
    %1287 = vmatprep.subr.mxu0 %v442
    %1288 = vmatpush1.msra.mxu0 %v441
    %1289 = vmatprep.subr.mxu0 %v446
    %1290 = vmatpush1.msra.mxu0 %v445
    %1291 = vmatprep.subr.mxu0 %v450
    %1292 = vmatpush1.msra.mxu0 %v449
    %1293 = vmatprep.subr.mxu0 %v454
    %1294 = vmatpush1.msra.mxu0 %v453
    %1295 = vmatprep.subr.mxu0 %v458
    %1296 = vmatpush1.msra.mxu0 %v457
    %1297 = vmatprep.subr.mxu0 %v462
    %1298 = vmatpush1.msra.mxu0 %v461
    %1299 = vmatprep.subr.mxu0 %v466
    %1300 = vmatpush1.msra.mxu0 %v465
    %1301 = vmatprep.subr.mxu0 %v470
    %1302 = vmatpush1.msra.mxu0 %v469
    %1303 = vmatprep.subr.mxu0 %v474
    %1304 = vmatpush1.msra.mxu0 %v473
    %1305 = vmatprep.subr.mxu0 0.0
    %1306 = vmatpush1.msra.mxu0 0.0
    %1307 = vmatprep.subr.mxu0 0.0
    %1308 = vmatpush1.msra.mxu0 0.0
    %1309 = vmatprep.subr.mxu0 0.0
    %1310 = vmatpush1.msra.mxu0 0.0
    %1311 = vmatprep.subr.mxu0 0.0
    %1312 = vmatpush1.msra.mxu0 0.0
    %1313 = vmatprep.subr.mxu0 0.0
    %1314 = vmatpush1.msra.mxu0 0.0
    %1315 = vmatprep.subr.mxu0 0.0
    %1316 = vmatpush1.msra.mxu0 0.0
    %1317 = vmatprep.subr.mxu0 0.0
    %1318 = vmatpush1.msra.mxu0 0.0
    %1319 = vmatprep.subr.mxu0 0.0
    %1320 = vmatpush1.msra.mxu0 0.0
    %1321 = vmatprep.subr.mxu0 0.0
    %1322 = vmatpush1.msra.mxu0 0.0
    %1323 = vmatprep.subr.mxu0 0.0
    %1324 = vmatpush1.msra.mxu0 0.0
    %1325 = vmatprep.subr.mxu0 0.0
    %1326 = vmatpush1.msra.mxu0 0.0
    %1327 = vmatprep.subr.mxu0 0.0
    %1328 = vmatpush1.msra.mxu0 0.0
    %1329 = vmatprep.subr.mxu0 0.0
    %1330 = vmatpush1.msra.mxu0 0.0
    %1331 = vmatprep.subr.mxu0 0.0
    %1332 = vmatpush1.msra.mxu0 0.0
    %1333 = vmatprep.subr.mxu0 0.0
    %1334 = vmatpush1.msra.mxu0 0.0
    %1335 = vmatprep.subr.mxu0 0.0
    %1336 = vmatpush1.msra.mxu0 0.0
    %1337 = vmatprep.mubr.f32.mxu0 0.0
    %1338 = vmatmul.mubr.f32.gmra.mrb[0].mxu0 %v1195
    %v1339 = vpop.f32.mrb[0].mxu0
    %v1340 = vadd.f32 %v1200, %v1339
    %v1341 = vpop.f32.mrb[0].mxu0
    %v1342 = vadd.f32 %v1201, %v1341
    %1343 = vdwg.mxu0
    %v1344 = vxor.u32 %v1269, 2147483648
    %v1345 = vmul.f32 %v1344, 1.442695
    %v1346 = vpow.pop %v1345
    %v1347 = vadd.f32 %v1346, 1.0
    %v1348 = vrcp.pop %v1347
    %v1349 = vmul.f32 1.0, %v1348
    %v1350 = vxor.u32 %v1271, 2147483648
    %v1351 = vmul.f32 %v1350, 1.442695
    %v1352 = vpow.pop %v1351
    %v1353 = vadd.f32 %v1352, 1.0
    %v1354 = vrcp.pop %v1353
    %v1355 = vmul.f32 1.0, %v1354
    %v1356 = vtanh.pop %v1340
    %v1357 = vxor.u32 %v1342, 2147483648
    %v1358 = vmul.f32 %v1357, 1.442695
    %v1359 = vpow.pop %v1358
    %v1360 = vadd.f32 %v1359, 1.0
    %v1361 = vrcp.pop %v1360
    %v1362 = vmul.f32 1.0, %v1361
    %v1363 = vmul.f32 %v1355, %v1193
    %v1364 = vmul.f32 %v1349, %v1356
    %v1365 = vadd.f32 %v1363, %v1364
    %v1366 = vtanh.pop %v1365
    %v1367 = vmul.f32 %v1362, %v1366
    %s1368 = scalar_lea.vmem [#allocation3], 8
    %1369 = vst [vmem:[%s1368] sm:$0x3] %v1367
    %v1370 = vld [vmem:[#allocation2 + $0x20] sm:$0xc]
    %v1371 = vld [vmem:[#allocation2 + $0x28] sm:$0xc]
    %v1372 = vld [vmem:[#allocation2 + $0x30] sm:$0xc]
    %v1373 = vld [vmem:[#allocation2 + $0x38] sm:$0xc]
    %v1378 = vrot.slane %v1370, 2
    %v1379 = vrot.slane %v1371, 2
    %v1380 = vrot.slane %v1372, 2
    %v1381 = vrot.slane %v1373, 2
    %1386 = vmatprep.subr.mxu0 %v412
    %1387 = vmatpush1.msra.mxu0 %v411
    %1388 = vmatprep.subr.mxu0 %v416
    %1389 = vmatpush1.msra.mxu0 %v415
    %1390 = vmatprep.subr.mxu0 %v420
    %1391 = vmatpush1.msra.mxu0 %v419
    %1392 = vmatprep.subr.mxu0 %v424
    %1393 = vmatpush1.msra.mxu0 %v423
    %1394 = vmatprep.subr.mxu0 %v428
    %1395 = vmatpush1.msra.mxu0 %v427
    %1396 = vmatprep.subr.mxu0 %v432
    %1397 = vmatpush1.msra.mxu0 %v431
    %1398 = vmatprep.subr.mxu0 %v436
    %1399 = vmatpush1.msra.mxu0 %v435
    %1400 = vmatprep.subr.mxu0 %v440
    %1401 = vmatpush1.msra.mxu0 %v439
    %1402 = vmatprep.subr.mxu0 %v444
    %1403 = vmatpush1.msra.mxu0 %v443
    %1404 = vmatprep.subr.mxu0 %v448
    %1405 = vmatpush1.msra.mxu0 %v447
    %1406 = vmatprep.subr.mxu0 %v452
    %1407 = vmatpush1.msra.mxu0 %v451
    %1408 = vmatprep.subr.mxu0 %v456
    %1409 = vmatpush1.msra.mxu0 %v455
    %1410 = vmatprep.subr.mxu0 %v460
    %1411 = vmatpush1.msra.mxu0 %v459
    %1412 = vmatprep.subr.mxu0 %v464
    %1413 = vmatpush1.msra.mxu0 %v463
    %1414 = vmatprep.subr.mxu0 %v468
    %1415 = vmatpush1.msra.mxu0 %v467
    %1416 = vmatprep.subr.mxu0 %v472
    %1417 = vmatpush1.msra.mxu0 %v471
    %1418 = vmatprep.subr.mxu0 0.0
    %1419 = vmatpush1.msra.mxu0 0.0
    %1420 = vmatprep.subr.mxu0 0.0
    %1421 = vmatpush1.msra.mxu0 0.0
    %1422 = vmatprep.subr.mxu0 0.0
    %1423 = vmatpush1.msra.mxu0 0.0
    %1424 = vmatprep.subr.mxu0 0.0
    %1425 = vmatpush1.msra.mxu0 0.0
    %1426 = vmatprep.subr.mxu0 0.0
    %1427 = vmatpush1.msra.mxu0 0.0
    %1428 = vmatprep.subr.mxu0 0.0
    %1429 = vmatpush1.msra.mxu0 0.0
    %1430 = vmatprep.subr.mxu0 0.0
    %1431 = vmatpush1.msra.mxu0 0.0
    %1432 = vmatprep.subr.mxu0 0.0
    %1433 = vmatpush1.msra.mxu0 0.0
    %1434 = vmatprep.subr.mxu0 0.0
    %1435 = vmatpush1.msra.mxu0 0.0
    %1436 = vmatprep.subr.mxu0 0.0
    %1437 = vmatpush1.msra.mxu0 0.0
    %1438 = vmatprep.subr.mxu0 0.0
    %1439 = vmatpush1.msra.mxu0 0.0
    %1440 = vmatprep.subr.mxu0 0.0
    %1441 = vmatpush1.msra.mxu0 0.0
    %1442 = vmatprep.subr.mxu0 0.0
    %1443 = vmatpush1.msra.mxu0 0.0
    %1444 = vmatprep.subr.mxu0 0.0
    %1445 = vmatpush1.msra.mxu0 0.0
    %1446 = vmatprep.subr.mxu0 0.0
    %1447 = vmatpush1.msra.mxu0 0.0
    %1448 = vmatprep.subr.mxu0 0.0
    %1449 = vmatpush1.msra.mxu0 0.0
    %1450 = vmatprep.mubr.f32.mxu0 0.0
    %1451 = vmatmul.mubr.f32.gmra.mrb[0].mxu0 %v1367
    %v1452 = vpop.f32.mrb[0].mxu0
    %v1453 = vadd.f32 %v1378, %v1452
    %v1454 = vpop.f32.mrb[0].mxu0
    %v1455 = vadd.f32 %v1379, %v1454
    %1456 = vdwg.mxu0
    %1457 = vmatprep.subr.mxu0 %v414
    %1458 = vmatpush1.msra.mxu0 %v413
    %1459 = vmatprep.subr.mxu0 %v418
    %1460 = vmatpush1.msra.mxu0 %v417
    %1461 = vmatprep.subr.mxu0 %v422
    %1462 = vmatpush1.msra.mxu0 %v421
    %1463 = vmatprep.subr.mxu0 %v426
    %1464 = vmatpush1.msra.mxu0 %v425
    %1465 = vmatprep.subr.mxu0 %v430
    %1466 = vmatpush1.msra.mxu0 %v429
    %1467 = vmatprep.subr.mxu0 %v434
    %1468 = vmatpush1.msra.mxu0 %v433
    %1469 = vmatprep.subr.mxu0 %v438
    %1470 = vmatpush1.msra.mxu0 %v437
    %1471 = vmatprep.subr.mxu0 %v442
    %1472 = vmatpush1.msra.mxu0 %v441
    %1473 = vmatprep.subr.mxu0 %v446
    %1474 = vmatpush1.msra.mxu0 %v445
    %1475 = vmatprep.subr.mxu0 %v450
    %1476 = vmatpush1.msra.mxu0 %v449
    %1477 = vmatprep.subr.mxu0 %v454
    %1478 = vmatpush1.msra.mxu0 %v453
    %1479 = vmatprep.subr.mxu0 %v458
    %1480 = vmatpush1.msra.mxu0 %v457
    %1481 = vmatprep.subr.mxu0 %v462
    %1482 = vmatpush1.msra.mxu0 %v461
    %1483 = vmatprep.subr.mxu0 %v466
    %1484 = vmatpush1.msra.mxu0 %v465
    %1485 = vmatprep.subr.mxu0 %v470
    %1486 = vmatpush1.msra.mxu0 %v469
    %1487 = vmatprep.subr.mxu0 %v474
    %1488 = vmatpush1.msra.mxu0 %v473
    %1489 = vmatprep.subr.mxu0 0.0
    %1490 = vmatpush1.msra.mxu0 0.0
    %1491 = vmatprep.subr.mxu0 0.0
    %1492 = vmatpush1.msra.mxu0 0.0
    %1493 = vmatprep.subr.mxu0 0.0
    %1494 = vmatpush1.msra.mxu0 0.0
    %1495 = vmatprep.subr.mxu0 0.0
    %1496 = vmatpush1.msra.mxu0 0.0
    %1497 = vmatprep.subr.mxu0 0.0
    %1498 = vmatpush1.msra.mxu0 0.0
    %1499 = vmatprep.subr.mxu0 0.0
    %1500 = vmatpush1.msra.mxu0 0.0
    %1501 = vmatprep.subr.mxu0 0.0
    %1502 = vmatpush1.msra.mxu0 0.0
    %1503 = vmatprep.subr.mxu0 0.0
    %1504 = vmatpush1.msra.mxu0 0.0
    %1505 = vmatprep.subr.mxu0 0.0
    %1506 = vmatpush1.msra.mxu0 0.0
    %1507 = vmatprep.subr.mxu0 0.0
    %1508 = vmatpush1.msra.mxu0 0.0
    %1509 = vmatprep.subr.mxu0 0.0
    %1510 = vmatpush1.msra.mxu0 0.0
    %1511 = vmatprep.subr.mxu0 0.0
    %1512 = vmatpush1.msra.mxu0 0.0
    %1513 = vmatprep.subr.mxu0 0.0
    %1514 = vmatpush1.msra.mxu0 0.0
    %1515 = vmatprep.subr.mxu0 0.0
    %1516 = vmatpush1.msra.mxu0 0.0
    %1517 = vmatprep.subr.mxu0 0.0
    %1518 = vmatpush1.msra.mxu0 0.0
    %1519 = vmatprep.subr.mxu0 0.0
    %1520 = vmatpush1.msra.mxu0 0.0
    %1521 = vmatprep.mubr.f32.mxu0 0.0
    %1522 = vmatmul.mubr.f32.gmra.mrb[0].mxu0 %v1367
    %v1523 = vpop.f32.mrb[0].mxu0
    %v1524 = vadd.f32 %v1380, %v1523
    %v1525 = vpop.f32.mrb[0].mxu0
    %v1526 = vadd.f32 %v1381, %v1525
    %1527 = vdwg.mxu0
    %v1528 = vxor.u32 %v1453, 2147483648
    %v1529 = vmul.f32 %v1528, 1.442695
    %v1530 = vpow.pop %v1529
    %v1531 = vadd.f32 %v1530, 1.0
    %v1532 = vrcp.pop %v1531
    %v1533 = vmul.f32 1.0, %v1532
    %v1534 = vxor.u32 %v1455, 2147483648
    %v1535 = vmul.f32 %v1534, 1.442695
    %v1536 = vpow.pop %v1535
    %v1537 = vadd.f32 %v1536, 1.0
    %v1538 = vrcp.pop %v1537
    %v1539 = vmul.f32 1.0, %v1538
    %v1540 = vtanh.pop %v1524
    %v1541 = vxor.u32 %v1526, 2147483648
    %v1542 = vmul.f32 %v1541, 1.442695
    %v1543 = vpow.pop %v1542
    %v1544 = vadd.f32 %v1543, 1.0
    %v1545 = vrcp.pop %v1544
    %v1546 = vmul.f32 1.0, %v1545
    %v1547 = vmul.f32 %v1539, %v1365
    %v1548 = vmul.f32 %v1533, %v1540
    %v1549 = vadd.f32 %v1547, %v1548
    %v1550 = vtanh.pop %v1549
    %v1551 = vmul.f32 %v1546, %v1550
    %s1552 = scalar_lea.vmem [#allocation3], 10
    %1553 = vst [vmem:[%s1552] sm:$0x3] %v1551
    %v1554 = vld [vmem:[#allocation2 + $0x20] sm:$0x30]
    %v1555 = vld [vmem:[#allocation2 + $0x28] sm:$0x30]
    %v1556 = vld [vmem:[#allocation2 + $0x30] sm:$0x30]
    %v1557 = vld [vmem:[#allocation2 + $0x38] sm:$0x30]
    %v1562 = vrot.slane %v1554, 4
    %v1563 = vrot.slane %v1555, 4
    %v1564 = vrot.slane %v1556, 4
    %v1565 = vrot.slane %v1557, 4
    %1570 = vmatprep.subr.mxu0 %v412
    %1571 = vmatpush1.msra.mxu0 %v411
    %1572 = vmatprep.subr.mxu0 %v416
    %1573 = vmatpush1.msra.mxu0 %v415
    %1574 = vmatprep.subr.mxu0 %v420
    %1575 = vmatpush1.msra.mxu0 %v419
    %1576 = vmatprep.subr.mxu0 %v424
    %1577 = vmatpush1.msra.mxu0 %v423
    %1578 = vmatprep.subr.mxu0 %v428
    %1579 = vmatpush1.msra.mxu0 %v427
    %1580 = vmatprep.subr.mxu0 %v432
    %1581 = vmatpush1.msra.mxu0 %v431
    %1582 = vmatprep.subr.mxu0 %v436
    %1583 = vmatpush1.msra.mxu0 %v435
    %1584 = vmatprep.subr.mxu0 %v440
    %1585 = vmatpush1.msra.mxu0 %v439
    %1586 = vmatprep.subr.mxu0 %v444
    %1587 = vmatpush1.msra.mxu0 %v443
    %1588 = vmatprep.subr.mxu0 %v448
    %1589 = vmatpush1.msra.mxu0 %v447
    %1590 = vmatprep.subr.mxu0 %v452
    %1591 = vmatpush1.msra.mxu0 %v451
    %1592 = vmatprep.subr.mxu0 %v456
    %1593 = vmatpush1.msra.mxu0 %v455
    %1594 = vmatprep.subr.mxu0 %v460
    %1595 = vmatpush1.msra.mxu0 %v459
    %1596 = vmatprep.subr.mxu0 %v464
    %1597 = vmatpush1.msra.mxu0 %v463
    %1598 = vmatprep.subr.mxu0 %v468
    %1599 = vmatpush1.msra.mxu0 %v467
    %1600 = vmatprep.subr.mxu0 %v472
    %1601 = vmatpush1.msra.mxu0 %v471
    %1602 = vmatprep.subr.mxu0 0.0
    %1603 = vmatpush1.msra.mxu0 0.0
    %1604 = vmatprep.subr.mxu0 0.0
    %1605 = vmatpush1.msra.mxu0 0.0
    %1606 = vmatprep.subr.mxu0 0.0
    %1607 = vmatpush1.msra.mxu0 0.0
    %1608 = vmatprep.subr.mxu0 0.0
    %1609 = vmatpush1.msra.mxu0 0.0
    %1610 = vmatprep.subr.mxu0 0.0
    %1611 = vmatpush1.msra.mxu0 0.0
    %1612 = vmatprep.subr.mxu0 0.0
    %1613 = vmatpush1.msra.mxu0 0.0
    %1614 = vmatprep.subr.mxu0 0.0
    %1615 = vmatpush1.msra.mxu0 0.0
    %1616 = vmatprep.subr.mxu0 0.0
    %1617 = vmatpush1.msra.mxu0 0.0
    %1618 = vmatprep.subr.mxu0 0.0
    %1619 = vmatpush1.msra.mxu0 0.0
    %1620 = vmatprep.subr.mxu0 0.0
    %1621 = vmatpush1.msra.mxu0 0.0
    %1622 = vmatprep.subr.mxu0 0.0
    %1623 = vmatpush1.msra.mxu0 0.0
    %1624 = vmatprep.subr.mxu0 0.0
    %1625 = vmatpush1.msra.mxu0 0.0
    %1626 = vmatprep.subr.mxu0 0.0
    %1627 = vmatpush1.msra.mxu0 0.0
    %1628 = vmatprep.subr.mxu0 0.0
    %1629 = vmatpush1.msra.mxu0 0.0
    %1630 = vmatprep.subr.mxu0 0.0
    %1631 = vmatpush1.msra.mxu0 0.0
    %1632 = vmatprep.subr.mxu0 0.0
    %1633 = vmatpush1.msra.mxu0 0.0
    %1634 = vmatprep.mubr.f32.mxu0 0.0
    %1635 = vmatmul.mubr.f32.gmra.mrb[0].mxu0 %v1551
    %v1636 = vpop.f32.mrb[0].mxu0
    %v1637 = vadd.f32 %v1562, %v1636
    %v1638 = vpop.f32.mrb[0].mxu0
    %v1639 = vadd.f32 %v1563, %v1638
    %1640 = vdwg.mxu0
    %1641 = vmatprep.subr.mxu0 %v414
    %1642 = vmatpush1.msra.mxu0 %v413
    %1643 = vmatprep.subr.mxu0 %v418
    %1644 = vmatpush1.msra.mxu0 %v417
    %1645 = vmatprep.subr.mxu0 %v422
    %1646 = vmatpush1.msra.mxu0 %v421
    %1647 = vmatprep.subr.mxu0 %v426
    %1648 = vmatpush1.msra.mxu0 %v425
    %1649 = vmatprep.subr.mxu0 %v430
    %1650 = vmatpush1.msra.mxu0 %v429
    %1651 = vmatprep.subr.mxu0 %v434
    %1652 = vmatpush1.msra.mxu0 %v433
    %1653 = vmatprep.subr.mxu0 %v438
    %1654 = vmatpush1.msra.mxu0 %v437
    %1655 = vmatprep.subr.mxu0 %v442
    %1656 = vmatpush1.msra.mxu0 %v441
    %1657 = vmatprep.subr.mxu0 %v446
    %1658 = vmatpush1.msra.mxu0 %v445
    %1659 = vmatprep.subr.mxu0 %v450
    %1660 = vmatpush1.msra.mxu0 %v449
    %1661 = vmatprep.subr.mxu0 %v454
    %1662 = vmatpush1.msra.mxu0 %v453
    %1663 = vmatprep.subr.mxu0 %v458
    %1664 = vmatpush1.msra.mxu0 %v457
    %1665 = vmatprep.subr.mxu0 %v462
    %1666 = vmatpush1.msra.mxu0 %v461
    %1667 = vmatprep.subr.mxu0 %v466
    %1668 = vmatpush1.msra.mxu0 %v465
    %1669 = vmatprep.subr.mxu0 %v470
    %1670 = vmatpush1.msra.mxu0 %v469
    %1671 = vmatprep.subr.mxu0 %v474
    %1672 = vmatpush1.msra.mxu0 %v473
    %1673 = vmatprep.subr.mxu0 0.0
    %1674 = vmatpush1.msra.mxu0 0.0
    %1675 = vmatprep.subr.mxu0 0.0
    %1676 = vmatpush1.msra.mxu0 0.0
    %1677 = vmatprep.subr.mxu0 0.0
    %1678 = vmatpush1.msra.mxu0 0.0
    %1679 = vmatprep.subr.mxu0 0.0
    %1680 = vmatpush1.msra.mxu0 0.0
    %1681 = vmatprep.subr.mxu0 0.0
    %1682 = vmatpush1.msra.mxu0 0.0
    %1683 = vmatprep.subr.mxu0 0.0
    %1684 = vmatpush1.msra.mxu0 0.0
    %1685 = vmatprep.subr.mxu0 0.0
    %1686 = vmatpush1.msra.mxu0 0.0
    %1687 = vmatprep.subr.mxu0 0.0
    %1688 = vmatpush1.msra.mxu0 0.0
    %1689 = vmatprep.subr.mxu0 0.0
    %1690 = vmatpush1.msra.mxu0 0.0
    %1691 = vmatprep.subr.mxu0 0.0
    %1692 = vmatpush1.msra.mxu0 0.0
    %1693 = vmatprep.subr.mxu0 0.0
    %1694 = vmatpush1.msra.mxu0 0.0
    %1695 = vmatprep.subr.mxu0 0.0
    %1696 = vmatpush1.msra.mxu0 0.0
    %1697 = vmatprep.subr.mxu0 0.0
    %1698 = vmatpush1.msra.mxu0 0.0
    %1699 = vmatprep.subr.mxu0 0.0
    %1700 = vmatpush1.msra.mxu0 0.0
    %1701 = vmatprep.subr.mxu0 0.0
    %1702 = vmatpush1.msra.mxu0 0.0
    %1703 = vmatprep.subr.mxu0 0.0
    %1704 = vmatpush1.msra.mxu0 0.0
    %1705 = vmatprep.mubr.f32.mxu0 0.0
    %1706 = vmatmul.mubr.f32.gmra.mrb[0].mxu0 %v1551
    %v1707 = vpop.f32.mrb[0].mxu0
    %v1708 = vadd.f32 %v1564, %v1707
    %v1709 = vpop.f32.mrb[0].mxu0
    %v1710 = vadd.f32 %v1565, %v1709
    %1711 = vdwg.mxu0
    %v1712 = vxor.u32 %v1637, 2147483648
    %v1713 = vmul.f32 %v1712, 1.442695
    %v1714 = vpow.pop %v1713
    %v1715 = vadd.f32 %v1714, 1.0
    %v1716 = vrcp.pop %v1715
    %v1717 = vmul.f32 1.0, %v1716
    %v1718 = vxor.u32 %v1639, 2147483648
    %v1719 = vmul.f32 %v1718, 1.442695
    %v1720 = vpow.pop %v1719
    %v1721 = vadd.f32 %v1720, 1.0
    %v1722 = vrcp.pop %v1721
    %v1723 = vmul.f32 1.0, %v1722
    %v1724 = vtanh.pop %v1708
    %v1725 = vxor.u32 %v1710, 2147483648
    %v1726 = vmul.f32 %v1725, 1.442695
    %v1727 = vpow.pop %v1726
    %v1728 = vadd.f32 %v1727, 1.0
    %v1729 = vrcp.pop %v1728
    %v1730 = vmul.f32 1.0, %v1729
    %v1731 = vmul.f32 %v1723, %v1549
    %v1732 = vmul.f32 %v1717, %v1724
    %v1733 = vadd.f32 %v1731, %v1732
    %v1734 = vtanh.pop %v1733
    %v1735 = vmul.f32 %v1730, %v1734
    %s1736 = scalar_lea.vmem [#allocation3], 12
    %1737 = vst [vmem:[%s1736] sm:$0x3] %v1735
    %v1738 = vld [vmem:[#allocation2 + $0x20] sm:$0xc0]
    %v1739 = vld [vmem:[#allocation2 + $0x28] sm:$0xc0]
    %v1740 = vld [vmem:[#allocation2 + $0x30] sm:$0xc0]
    %v1741 = vld [vmem:[#allocation2 + $0x38] sm:$0xc0]
    %v1746 = vrot.slane %v1738, 6
    %v1747 = vrot.slane %v1739, 6
    %v1748 = vrot.slane %v1740, 6
    %v1749 = vrot.slane %v1741, 6
    %1754 = vmatprep.subr.mxu0 %v412
    %1755 = vmatpush1.msra.mxu0 %v411
    %1756 = vmatprep.subr.mxu0 %v416
    %1757 = vmatpush1.msra.mxu0 %v415
    %1758 = vmatprep.subr.mxu0 %v420
    %1759 = vmatpush1.msra.mxu0 %v419
    %1760 = vmatprep.subr.mxu0 %v424
    %1761 = vmatpush1.msra.mxu0 %v423
    %1762 = vmatprep.subr.mxu0 %v428
    %1763 = vmatpush1.msra.mxu0 %v427
    %1764 = vmatprep.subr.mxu0 %v432
    %1765 = vmatpush1.msra.mxu0 %v431
    %1766 = vmatprep.subr.mxu0 %v436
    %1767 = vmatpush1.msra.mxu0 %v435
    %1768 = vmatprep.subr.mxu0 %v440
    %1769 = vmatpush1.msra.mxu0 %v439
    %1770 = vmatprep.subr.mxu0 %v444
    %1771 = vmatpush1.msra.mxu0 %v443
    %1772 = vmatprep.subr.mxu0 %v448
    %1773 = vmatpush1.msra.mxu0 %v447
    %1774 = vmatprep.subr.mxu0 %v452
    %1775 = vmatpush1.msra.mxu0 %v451
    %1776 = vmatprep.subr.mxu0 %v456
    %1777 = vmatpush1.msra.mxu0 %v455
    %1778 = vmatprep.subr.mxu0 %v460
    %1779 = vmatpush1.msra.mxu0 %v459
    %1780 = vmatprep.subr.mxu0 %v464
    %1781 = vmatpush1.msra.mxu0 %v463
    %1782 = vmatprep.subr.mxu0 %v468
    %1783 = vmatpush1.msra.mxu0 %v467
    %1784 = vmatprep.subr.mxu0 %v472
    %1785 = vmatpush1.msra.mxu0 %v471
    %1786 = vmatprep.subr.mxu0 0.0
    %1787 = vmatpush1.msra.mxu0 0.0
    %1788 = vmatprep.subr.mxu0 0.0
    %1789 = vmatpush1.msra.mxu0 0.0
    %1790 = vmatprep.subr.mxu0 0.0
    %1791 = vmatpush1.msra.mxu0 0.0
    %1792 = vmatprep.subr.mxu0 0.0
    %1793 = vmatpush1.msra.mxu0 0.0
    %1794 = vmatprep.subr.mxu0 0.0
    %1795 = vmatpush1.msra.mxu0 0.0
    %1796 = vmatprep.subr.mxu0 0.0
    %1797 = vmatpush1.msra.mxu0 0.0
    %1798 = vmatprep.subr.mxu0 0.0
    %1799 = vmatpush1.msra.mxu0 0.0
    %1800 = vmatprep.subr.mxu0 0.0
    %1801 = vmatpush1.msra.mxu0 0.0
    %1802 = vmatprep.subr.mxu0 0.0
    %1803 = vmatpush1.msra.mxu0 0.0
    %1804 = vmatprep.subr.mxu0 0.0
    %1805 = vmatpush1.msra.mxu0 0.0
    %1806 = vmatprep.subr.mxu0 0.0
    %1807 = vmatpush1.msra.mxu0 0.0
    %1808 = vmatprep.subr.mxu0 0.0
    %1809 = vmatpush1.msra.mxu0 0.0
    %1810 = vmatprep.subr.mxu0 0.0
    %1811 = vmatpush1.msra.mxu0 0.0
    %1812 = vmatprep.subr.mxu0 0.0
    %1813 = vmatpush1.msra.mxu0 0.0
    %1814 = vmatprep.subr.mxu0 0.0
    %1815 = vmatpush1.msra.mxu0 0.0
    %1816 = vmatprep.subr.mxu0 0.0
    %1817 = vmatpush1.msra.mxu0 0.0
    %1818 = vmatprep.mubr.f32.mxu0 0.0
    %1819 = vmatmul.mubr.f32.gmra.mrb[0].mxu0 %v1735
    %v1820 = vpop.f32.mrb[0].mxu0
    %v1821 = vadd.f32 %v1746, %v1820
    %v1822 = vpop.f32.mrb[0].mxu0
    %v1823 = vadd.f32 %v1747, %v1822
    %1824 = vdwg.mxu0
    %1825 = vmatprep.subr.mxu0 %v414
    %1826 = vmatpush1.msra.mxu0 %v413
    %1827 = vmatprep.subr.mxu0 %v418
    %1828 = vmatpush1.msra.mxu0 %v417
    %1829 = vmatprep.subr.mxu0 %v422
    %1830 = vmatpush1.msra.mxu0 %v421
    %1831 = vmatprep.subr.mxu0 %v426
    %1832 = vmatpush1.msra.mxu0 %v425
    %1833 = vmatprep.subr.mxu0 %v430
    %1834 = vmatpush1.msra.mxu0 %v429
    %1835 = vmatprep.subr.mxu0 %v434
    %1836 = vmatpush1.msra.mxu0 %v433
    %1837 = vmatprep.subr.mxu0 %v438
    %1838 = vmatpush1.msra.mxu0 %v437
    %1839 = vmatprep.subr.mxu0 %v442
    %1840 = vmatpush1.msra.mxu0 %v441
    %1841 = vmatprep.subr.mxu0 %v446
    %1842 = vmatpush1.msra.mxu0 %v445
    %1843 = vmatprep.subr.mxu0 %v450
    %1844 = vmatpush1.msra.mxu0 %v449
    %1845 = vmatprep.subr.mxu0 %v454
    %1846 = vmatpush1.msra.mxu0 %v453
    %1847 = vmatprep.subr.mxu0 %v458
    %1848 = vmatpush1.msra.mxu0 %v457
    %1849 = vmatprep.subr.mxu0 %v462
    %1850 = vmatpush1.msra.mxu0 %v461
    %1851 = vmatprep.subr.mxu0 %v466
    %1852 = vmatpush1.msra.mxu0 %v465
    %1853 = vmatprep.subr.mxu0 %v470
    %1854 = vmatpush1.msra.mxu0 %v469
    %1855 = vmatprep.subr.mxu0 %v474
    %1856 = vmatpush1.msra.mxu0 %v473
    %1857 = vmatprep.subr.mxu0 0.0
    %1858 = vmatpush1.msra.mxu0 0.0
    %1859 = vmatprep.subr.mxu0 0.0
    %1860 = vmatpush1.msra.mxu0 0.0
    %1861 = vmatprep.subr.mxu0 0.0
    %1862 = vmatpush1.msra.mxu0 0.0
    %1863 = vmatprep.subr.mxu0 0.0
    %1864 = vmatpush1.msra.mxu0 0.0
    %1865 = vmatprep.subr.mxu0 0.0
    %1866 = vmatpush1.msra.mxu0 0.0
    %1867 = vmatprep.subr.mxu0 0.0
    %1868 = vmatpush1.msra.mxu0 0.0
    %1869 = vmatprep.subr.mxu0 0.0
    %1870 = vmatpush1.msra.mxu0 0.0
    %1871 = vmatprep.subr.mxu0 0.0
    %1872 = vmatpush1.msra.mxu0 0.0
    %1873 = vmatprep.subr.mxu0 0.0
    %1874 = vmatpush1.msra.mxu0 0.0
    %1875 = vmatprep.subr.mxu0 0.0
    %1876 = vmatpush1.msra.mxu0 0.0
    %1877 = vmatprep.subr.mxu0 0.0
    %1878 = vmatpush1.msra.mxu0 0.0
    %1879 = vmatprep.subr.mxu0 0.0
    %1880 = vmatpush1.msra.mxu0 0.0
    %1881 = vmatprep.subr.mxu0 0.0
    %1882 = vmatpush1.msra.mxu0 0.0
    %1883 = vmatprep.subr.mxu0 0.0
    %1884 = vmatpush1.msra.mxu0 0.0
    %1885 = vmatprep.subr.mxu0 0.0
    %1886 = vmatpush1.msra.mxu0 0.0
    %1887 = vmatprep.subr.mxu0 0.0
    %1888 = vmatpush1.msra.mxu0 0.0
    %1889 = vmatprep.mubr.f32.mxu0 0.0
    %1890 = vmatmul.mubr.f32.gmra.mrb[0].mxu0 %v1735
    %v1891 = vpop.f32.mrb[0].mxu0
    %v1892 = vadd.f32 %v1748, %v1891
    %v1893 = vpop.f32.mrb[0].mxu0
    %v1894 = vadd.f32 %v1749, %v1893
    %1895 = vdwg.mxu0
    %v1896 = vxor.u32 %v1821, 2147483648
    %v1897 = vmul.f32 %v1896, 1.442695
    %v1898 = vpow.pop %v1897
    %v1899 = vadd.f32 %v1898, 1.0
    %v1900 = vrcp.pop %v1899
    %v1901 = vmul.f32 1.0, %v1900
    %v1902 = vxor.u32 %v1823, 2147483648
    %v1903 = vmul.f32 %v1902, 1.442695
    %v1904 = vpow.pop %v1903
    %v1905 = vadd.f32 %v1904, 1.0
    %v1906 = vrcp.pop %v1905
    %v1907 = vmul.f32 1.0, %v1906
    %v1908 = vtanh.pop %v1892
    %v1909 = vxor.u32 %v1894, 2147483648
    %v1910 = vmul.f32 %v1909, 1.442695
    %v1911 = vpow.pop %v1910
    %v1912 = vadd.f32 %v1911, 1.0
    %v1913 = vrcp.pop %v1912
    %v1914 = vmul.f32 1.0, %v1913
    %v1915 = vmul.f32 %v1907, %v1733
    %v1916 = vmul.f32 %v1901, %v1908
    %v1917 = vadd.f32 %v1915, %v1916
    %v1918 = vtanh.pop %v1917
    %v1919 = vmul.f32 %v1914, %v1918
    %s1920 = scalar_lea.vmem [#allocation3], 14
    %1921 = vst [vmem:[%s1920] sm:$0x3] %v1919
    %v1922 = vld [vmem:[#allocation3] sm:$0x3]
    %v1923 = vld [vmem:[#allocation3 + $0x2] sm:$0x3]
    %v1924 = vld [vmem:[#allocation3 + $0x4] sm:$0x3]
    %v1925 = vld [vmem:[#allocation3 + $0x6] sm:$0x3]
    %v1926 = vld [vmem:[#allocation3 + $0x8] sm:$0x3]
    %v1927 = vld [vmem:[#allocation3 + $0xa] sm:$0x3]
    %v1928 = vld [vmem:[#allocation3 + $0xc] sm:$0x3]
    %v1929 = vld [vmem:[#allocation3 + $0xe] sm:$0x3]
    %v1938 = vrot.slane %v1923, 7
    %vm1939 = vcmask 1041409
    %v1940 = vsel %vm1939, %v1938, %v1922
    %v1941 = vrot.slane %v1924, 6
    %vm1942 = vcmask 1042434
    %v1943 = vsel %vm1942, %v1941, %v1940
    %v1944 = vrot.slane %v1925, 5
    %vm1945 = vcmask 1043459
    %v1946 = vsel %vm1945, %v1944, %v1943
    %v1947 = vrot.slane %v1926, 4
    %vm1948 = vcmask 1044484
    %v1949 = vsel %vm1948, %v1947, %v1946
    %v1950 = vrot.slane %v1927, 3
    %vm1951 = vcmask 1045509
    %v1952 = vsel %vm1951, %v1950, %v1949
    %v1953 = vrot.slane %v1928, 2
    %vm1954 = vcmask 1046534
    %v1955 = vsel %vm1954, %v1953, %v1952
    %v1956 = vrot.slane %v1929, 1
    %vm1957 = vcmask 1047559
    %v1958 = vsel %vm1957, %v1956, %v1955
    %1960 = vst [vmem:[#allocation4] sm:$0xff] %v1958
    %v1961 = vsel %vm1942, %v1938, %v1922
    %v1962 = vsel %vm1945, %v1941, %v1961
    %v1963 = vsel %vm1948, %v1944, %v1962
    %v1964 = vsel %vm1951, %v1947, %v1963
    %v1965 = vsel %vm1954, %v1950, %v1964
    %v1966 = vsel %vm1957, %v1953, %v1965
    %s1969 = scalar_lea.vmem [#allocation4], 8
    %1970 = vst [vmem:[%s1969 - $0x1] sm:$0xfe] %v1966
    %1971 = vst [vmem:[%s1969 + $0x7] sm:$0x1] %v1956
    %v1974 = vunpack.c.l.s4 1966171168
    %v1975 = vunpack.c.0.s8 %v1974
    %v1976 = vlaneseq
    %v1977 = vshrl.u32 %v1976, 7
    %v1978 = vsub.s32 %v1975, %v1977
    %v1979 = vrot.slane %v1919, %v1978
    %v1980 = vcombine.high %v1979, %v1979
    %v1982 = vunpack.c.l.s4 1966171168
    %v1983 = vunpack.c.0.s8 %v1982
    %v1984 = vlaneseq
    %v1985 = vshrl.u32 %v1984, 7
    %v1986 = vsub.s32 %v1983, %v1985
    %v1987 = vrot.slane %v1979, %v1986
    %v1989 = vunpack.c.l.s4 1966171168
    %v1990 = vunpack.c.0.s8 %v1989
    %v1991 = vlaneseq
    %v1992 = vshrl.u32 %v1991, 7
    %v1993 = vsub.s32 %v1990, %v1992
    %v1994 = vrot.slane %v1980, %v1993
    %1997 = vst [vmem:[#allocation6] sm:$0x1] %v1987
    %1998 = vst [vmem:[#allocation6 + $0x1] sm:$0x1] %v1994
    %v2001 = vunpack.c.l.s4 1966171168
    %v2002 = vunpack.c.0.s8 %v2001
    %v2003 = vlaneseq
    %v2004 = vshrl.u32 %v2003, 7
    %v2005 = vsub.s32 %v2002, %v2004
    %v2006 = vrot.slane %v1917, %v2005
    %v2007 = vcombine.high %v2006, %v2006
    %v2009 = vunpack.c.l.s4 1966171168
    %v2010 = vunpack.c.0.s8 %v2009
    %v2011 = vlaneseq
    %v2012 = vshrl.u32 %v2011, 7
    %v2013 = vsub.s32 %v2010, %v2012
    %v2014 = vrot.slane %v2006, %v2013
    %v2016 = vunpack.c.l.s4 1966171168
    %v2017 = vunpack.c.0.s8 %v2016
    %v2018 = vlaneseq
    %v2019 = vshrl.u32 %v2018, 7
    %v2020 = vsub.s32 %v2017, %v2019
    %v2021 = vrot.slane %v2007, %v2020
    %2024 = vst [vmem:[#allocation8] sm:$0x1] %v2014
    %2025 = vst [vmem:[#allocation8 + $0x1] sm:$0x1] %v2021
    // Predicated region
    $region22: #{encoder_forward.1} parent=1 // pred_check
      _
    $region23: #{encoder_forward.1} parent=1 // pred_check_branch
      %2027 = sbr.rel (0) target = $region25
    $region24: #{encoder_forward.1} parent=1 // pred_region
      %s2029 = ssub.s32 256, 256
      %2030 = vsyncadd [#allocation5], %s2029
      %s2031 = sshll.u32 [#allocation4], 4
      %s2032 = int_to_ptr.vmem [resolvable:$true] %s2031
      %2037 = dma.vmem_to_hbm [thread:$0]  %s2032, 256, %s5, [#allocation5], 128, 128, 8
    $region25: #{encoder_forward.1} parent=1 // pred_fallthru
      _
    // Predicated region
    $region26: #{encoder_forward.1} parent=1 // pred_check
      _
    $region27: #{encoder_forward.1} parent=1 // pred_check_branch
      %2039 = sbr.rel (0) target = $region29
    $region28: #{encoder_forward.1} parent=1 // pred_region
      %s2041 = ssub.s32 32, 32
      %2042 = vsyncadd [#allocation7], %s2041
      %s2043 = sshll.u32 [#allocation6], 4
      %s2044 = int_to_ptr.vmem [resolvable:$true] %s2043
      %2049 = dma.vmem_to_hbm [thread:$0]  %s2044, 32, %s6, [#allocation7], 16, 16, 1
    $region29: #{encoder_forward.1} parent=1 // pred_fallthru
      _
    // Predicated region
    $region30: #{encoder_forward.1} parent=1 // pred_check
      _
    $region31: #{encoder_forward.1} parent=1 // pred_check_branch
      %2051 = sbr.rel (0) target = $region33
    $region32: #{encoder_forward.1} parent=1 // pred_region
      %s2053 = ssub.s32 32, 32
      %2054 = vsyncadd [#allocation7], %s2053
      %s2055 = sshll.u32 [#allocation8], 4
      %s2056 = int_to_ptr.vmem [resolvable:$true] %s2055
      %2061 = dma.vmem_to_hbm [thread:$0]  %s2056, 32, %s7, [#allocation7], 16, 16, 1
    $region33: #{encoder_forward.1} parent=1 // pred_fallthru
      _
    // Predicated region
    $region34: #{encoder_forward.1} parent=1 // pred_check
      _
    $region35: #{encoder_forward.1} parent=1 // pred_check_branch
      %2063 = sbr.rel (0) target = $region37
    $region36: #{encoder_forward.1} parent=1 // pred_region
      %2064 = dma.done [#allocation5], 256
    $region37: #{encoder_forward.1} parent=1 // pred_fallthru
      _
    // Predicated region
    $region38: #{encoder_forward.1} parent=1 // pred_check
      _
    $region39: #{encoder_forward.1} parent=1 // pred_check_branch
      %2066 = sbr.rel (0) target = $region41
    $region40: #{encoder_forward.1} parent=1 // pred_region
      %2067 = dma.done [#allocation7], 32
    $region41: #{encoder_forward.1} parent=1 // pred_fallthru
      _
    // Predicated region
    $region42: #{encoder_forward.1} parent=1 // pred_check
      _
    $region43: #{encoder_forward.1} parent=1 // pred_check_branch
      %2069 = sbr.rel (0) target = $region45
    $region44: #{encoder_forward.1} parent=1 // pred_region
      %2070 = dma.done [#allocation7], 32
    $region45: #{encoder_forward.1} parent=1 // pred_fallthru
      _
    %2071 = vsyncpa [#allocation5], 1
    %2072 = vsyncpa [#allocation7], 1

</llo_original>
